<compile_context>
chip_gen: v5e
topology: v5e:2x2
jax: 0.10.0
libtpu: 0.0.40
codegen_flags: <defaults>
</compile_context>

<pallas_src>
import functools

import jax
import jax.numpy as jnp
from jax.experimental import pallas as pl
from jax.experimental.pallas import tpu as pltpu


# ----------------------------------------------------------------------------
# Kernel: one (batch element, layer) grid step
# ----------------------------------------------------------------------------
def _fused_transformer_kernel(x_ref, wqkv_ref, wout_ref, bout_ref,
                              ln1g_ref, ln1b_ref,
                              w1_ref, b1_ref, w2_ref, b2_ref,
                              ln2g_ref, ln2b_ref,
                              o_ref, x_scr, *, heads, precise, eps=1e-5):
    l = pl.program_id(1)

    # New batch element -> (re)load x into the resident VMEM carry.
    @pl.when(l == 0)
    def _():
        x_scr[...] = x_ref[0].astype(jnp.float32)

    x = x_scr[...]                               # (N, D) f32
    N, D = x.shape
    dh = D // heads
    scale = float(D) ** -0.5                     # matches PyTorch `dim ** (-0.5)`
    mm_dtype = jnp.float32 if precise else jnp.bfloat16

    def layer_norm(z, g, b):
        mu = jnp.mean(z, axis=-1, keepdims=True)
        var = jnp.mean(jnp.square(z - mu), axis=-1, keepdims=True)
        return (z - mu) * jax.lax.rsqrt(var + eps) * g + b

    def mm(a, w_ref):
        # MXU matmul: operands in the weight dtype (bf16 on the fast path),
        # f32 accumulation.
        return jnp.dot(a.astype(w_ref.dtype), w_ref[0],
                       preferred_element_type=jnp.float32)

    def split_heads(t):                          # (N, D) -> (H, N, dh)
        return jnp.stack([t[:, h * dh:(h + 1) * dh] for h in range(heads)],
                         axis=0)

    # ---------------- Residual(PreNorm(Attention)) ----------------
    xn = layer_norm(x, ln1g_ref[0], ln1b_ref[0])
    qkv = mm(xn, wqkv_ref)                       # (N, 3D), f32 accumulation
    q = split_heads(qkv[:, 0:D] * scale)         # scale folded into q (N*D mults)
    k = split_heads(qkv[:, D:2 * D])
    v = split_heads(qkv[:, 2 * D:3 * D])

    # Single batched contraction over all heads (no per-head matmul loop).
    dots = jnp.einsum("hnd,hmd->hnm", q.astype(mm_dtype), k.astype(mm_dtype),
                      preferred_element_type=jnp.float32)        # (H, N, N)
    dots = dots - jnp.max(dots, axis=-1, keepdims=True)
    p = jnp.exp(dots)
    denom = jnp.sum(p, axis=-1, keepdims=True)
    if precise:
        attn = p / denom
    else:
        attn = p * pl.reciprocal(denom, approx=True)             # EUP slot
    ctx = jnp.einsum("hnm,hmd->hnd", attn.astype(mm_dtype), v.astype(mm_dtype),
                     preferred_element_type=jnp.float32)         # (H, N, dh)
    # merge heads: 'b h n d -> b n (h d)'
    attn_out = jnp.concatenate([ctx[h] for h in range(heads)], axis=-1)
    x = x + mm(attn_out, wout_ref) + bout_ref[0]

    # ---------------- Residual(PreNorm(FeedForward)) ----------------
    xn2 = layer_norm(x, ln2g_ref[0], ln2b_ref[0])
    h1 = jnp.maximum(mm(xn2, w1_ref) + b1_ref[0], 0.0)           # ReLU
    x = x + mm(h1, w2_ref) + b2_ref[0]

    x_scr[...] = x                               # carry to next layer in VMEM
    o_ref[0, 0] = x.astype(o_ref.dtype)          # per-layer output (module API)
    # TODO(synk): flash-style KV tiling (online softmax) so (H, N, N) scores
    # never materialize at large N; unnecessary at these shapes.


# ----------------------------------------------------------------------------
# Wrapper: one pallas_call for the whole depth-layer stack
# ----------------------------------------------------------------------------
_BIG = ("wqkv", "wout", "w1", "w2")
_SMALL = ("bout", "ln1g", "ln1b", "b1", "b2", "ln2g", "ln2b")
_ORDER = ("wqkv", "wout", "bout", "ln1g", "ln1b",
          "w1", "b1", "w2", "b2", "ln2g", "ln2b")


def multiout_transformer(x, params, heads, *, precise=True):
    """Equivalent of Single_Multi_Layer_Multiout_Transformer.forward(x, None).

    params: dict of per-layer-stacked arrays, leading axis = depth.
    precise=True : f32 matmuls, exact softmax normalization.
    precise=False: bf16 matmul operands + bf16 weight DMA, approx reciprocal.
    Returns ([x after layer 0, ..., x after layer depth-1], final x).
    """
    B, N, D = x.shape
    depth = params["wqkv"].shape[0]
    mm_dtype = jnp.float32 if precise else jnp.bfloat16

    weights = []
    for name in _ORDER:
        w = params[name]
        weights.append(w.astype(mm_dtype) if name in _BIG
                       else w.astype(jnp.float32))

    in_specs = [pl.BlockSpec((1, N, D), lambda b, l: (b, 0, 0))]
    for w in weights:
        blk = (1,) + w.shape[1:]
        nd = w.ndim
        in_specs.append(
            pl.BlockSpec(blk, lambda b, l, _nd=nd: (l,) + (0,) * (_nd - 1)))

    out = pl.pallas_call(
        functools.partial(_fused_transformer_kernel, heads=heads,
                          precise=precise),
        out_shape=jax.ShapeDtypeStruct((depth, B, N, D), x.dtype),
        grid=(B, depth),
        in_specs=in_specs,
        out_specs=pl.BlockSpec((1, 1, N, D), lambda b, l: (l, b, 0, 0)),
        scratch_shapes=[pltpu.VMEM((N, D), jnp.float32)],
        compiler_params=pltpu.CompilerParams(
            dimension_semantics=("parallel", "arbitrary"),
            vmem_limit_bytes=32 * 1024 * 1024,
        ),
    )(x, *weights)

    my_x = [out[l] for l in range(depth)]
    return my_x, my_x[-1]


# ----------------------------------------------------------------------------
# Pure-JAX reference (same math) for the correctness check
# ----------------------------------------------------------------------------
def _reference_forward(x, params, heads, eps=1e-5):
    depth = params["wqkv"].shape[0]
    B, N, D = x.shape
    dh = D // heads
    scale = float(D) ** -0.5

    def ln(z, g, b):
        mu = jnp.mean(z, axis=-1, keepdims=True)
        var = jnp.mean((z - mu) ** 2, axis=-1, keepdims=True)
        return (z - mu) / jnp.sqrt(var + eps) * g + b

    outs = []
    for l in range(depth):
        xn = ln(x, params["ln1g"][l], params["ln1b"][l])
        qkv = xn @ params["wqkv"][l]
        q, k, v = jnp.split(qkv, 3, axis=-1)
        q = q.reshape(B, N, heads, dh).transpose(0, 2, 1, 3)
        k = k.reshape(B, N, heads, dh).transpose(0, 2, 1, 3)
        v = v.reshape(B, N, heads, dh).transpose(0, 2, 1, 3)
        dots = jnp.einsum("bhid,bhjd->bhij", q, k) * scale
        attn = jax.nn.softmax(dots, axis=-1)
        o = jnp.einsum("bhij,bhjd->bhid", attn, v)
        o = o.transpose(0, 2, 1, 3).reshape(B, N, D)
        x = x + (o @ params["wout"][l] + params["bout"][l])
        xn2 = ln(x, params["ln2g"][l], params["ln2b"][l])
        h1 = jnp.maximum(xn2 @ params["w1"][l] + params["b1"][l], 0.0)
        x = x + (h1 @ params["w2"][l] + params["b2"][l])
        outs.append(x)
    return outs, x


# ----------------------------------------------------------------------------
# Deterministic parameter init (per-layer stacked along leading axis)
# ----------------------------------------------------------------------------
def init_params(key, depth, dim, mlp_dim):
    ks = jax.random.split(key, 6)
    f32 = jnp.float32
    return {
        "wqkv": jax.random.normal(ks[0], (depth, dim, 3 * dim), f32) * 0.05,
        "wout": jax.random.normal(ks[1], (depth, dim, dim), f32) * 0.05,
        "bout": jax.random.normal(ks[2], (depth, 1, dim), f32) * 0.01,
        "ln1g": jnp.ones((depth, 1, dim), f32),
        "ln1b": jnp.zeros((depth, 1, dim), f32),
        "w1": jax.random.normal(ks[3], (depth, dim, mlp_dim), f32) * 0.05,
        "b1": jax.random.normal(ks[4], (depth, 1, mlp_dim), f32) * 0.01,
        "w2": jax.random.normal(ks[5], (depth, mlp_dim, dim), f32) * 0.05,
        "b2": jnp.zeros((depth, 1, dim), f32),
        "ln2g": jnp.ones((depth, 1, dim), f32),
        "ln2b": jnp.zeros((depth, 1, dim), f32),
    }


if __name__ == "__main__":
    # Module hyperparameters (small, consistent with the forward)
    dim, depth, heads, mlp_ratio, dropout = 32, 2, 4, 2, 0.0
    mlp_dim = dim * mlp_ratio
    B, N = 2, 8

    key = jax.random.PRNGKey(0)
    kx, kp = jax.random.split(key)
    x = jax.random.normal(kx, (B, N, dim), jnp.float32)
    params = init_params(kp, depth, dim, mlp_dim)

    ref_outs, ref_final = _reference_forward(x, params, heads)

    # ---- precise path (f32 matmuls, exact softmax) ----
    my_x, x_final = multiout_transformer(x, params, heads, precise=True)
    x_final = jax.block_until_ready(x_final)
    my_x = [jax.block_until_ready(o) for o in my_x]
    for got, want in zip(my_x, ref_outs):
        assert jnp.allclose(got, want, atol=1e-4, rtol=1e-4), "precise layer mismatch"
    assert jnp.allclose(x_final, ref_final, atol=1e-4, rtol=1e-4), "precise final mismatch"

    # ---- fast path (bf16 matmul operands/weights, approx reciprocal) ----
    my_x_f, x_final_f = multiout_transformer(x, params, heads, precise=False)
    x_final_f = jax.block_until_ready(x_final_f)
    my_x_f = [jax.block_until_ready(o) for o in my_x_f]
    for got, want in zip(my_x_f, ref_outs):
        assert jnp.allclose(got, want, atol=5e-2, rtol=5e-2), "fast layer mismatch"
    assert jnp.allclose(x_final_f, ref_final, atol=5e-2, rtol=5e-2), "fast final mismatch"

    assert len(my_x) == depth and my_x[-1].shape == (B, N, dim)
    print("KERNEL_OK")
</pallas_src>

<mosaic_0001>
module attributes {stable_mosaic.version = 11 : i64} {
  func.func @_fused_transformer_kernel(%arg0: i32, %arg1: i32, %arg2: memref<1x8x32xf32, #tpu.memory_space<vmem>>, %arg3: memref<1x32x96xf32, #tpu.memory_space<vmem>>, %arg4: memref<1x32x32xf32, #tpu.memory_space<vmem>>, %arg5: memref<1x1x32xf32, #tpu.memory_space<vmem>>, %arg6: memref<1x1x32xf32, #tpu.memory_space<vmem>>, %arg7: memref<1x1x32xf32, #tpu.memory_space<vmem>>, %arg8: memref<1x32x64xf32, #tpu.memory_space<vmem>>, %arg9: memref<1x1x64xf32, #tpu.memory_space<vmem>>, %arg10: memref<1x64x32xf32, #tpu.memory_space<vmem>>, %arg11: memref<1x1x32xf32, #tpu.memory_space<vmem>>, %arg12: memref<1x1x32xf32, #tpu.memory_space<vmem>>, %arg13: memref<1x1x32xf32, #tpu.memory_space<vmem>>, %arg14: memref<1x1x8x32xf32, #tpu.memory_space<vmem>>, %arg15: memref<8x32xf32, #tpu.memory_space<vmem>>) attributes {dimension_semantics = [#tpu.dimension_semantics<parallel>, #tpu.dimension_semantics<arbitrary>], iteration_bounds = array<i64: 2, 2>, scalar_prefetch = 0 : i64, scratch_operands = 1 : i64, tpu.core_type = #tpu.core_type<tc>, window_params = [{transform_indices = @transform_0, window_bounds = array<i64: 1, 8, 32>}, {transform_indices = @transform_1, window_bounds = array<i64: 1, 32, 96>}, {transform_indices = @transform_2, window_bounds = array<i64: 1, 32, 32>}, {transform_indices = @transform_3, window_bounds = array<i64: 1, 1, 32>}, {transform_indices = @transform_4, window_bounds = array<i64: 1, 1, 32>}, {transform_indices = @transform_5, window_bounds = array<i64: 1, 1, 32>}, {transform_indices = @transform_6, window_bounds = array<i64: 1, 32, 64>}, {transform_indices = @transform_7, window_bounds = array<i64: 1, 1, 64>}, {transform_indices = @transform_8, window_bounds = array<i64: 1, 64, 32>}, {transform_indices = @transform_9, window_bounds = array<i64: 1, 1, 32>}, {transform_indices = @transform_10, window_bounds = array<i64: 1, 1, 32>}, {transform_indices = @transform_11, window_bounds = array<i64: 1, 1, 32>}, {transform_indices = @transform_12, window_bounds = array<i64: 1, 1, 8, 32>}]} {
    %c0_i32 = arith.constant 0 : i32
    %0 = arith.cmpi eq, %arg1, %c0_i32 : i32
    %1 = arith.extui %0 : i1 to i32
    %c0_i32_0 = arith.constant 0 : i32
    %2 = arith.cmpi ne, %1, %c0_i32_0 : i32
    scf.if %2 {
      %c0_60 = arith.constant 0 : index
      %c0_61 = arith.constant 0 : index
      %c0_62 = arith.constant 0 : index
      %140 = vector.load %arg2[%c0_60, %c0_61, %c0_62] : memref<1x8x32xf32, #tpu.memory_space<vmem>>, vector<1x8x32xf32>
      %141 = vector.shape_cast %140 : vector<1x8x32xf32> to vector<8x32xf32>
      %c0_63 = arith.constant 0 : index
      %c0_64 = arith.constant 0 : index
      %142 = vector.load %arg15[%c0_63, %c0_64] : memref<8x32xf32, #tpu.memory_space<vmem>>, vector<8x32xf32>
      tpu.vector_store %arg15[%c0_63, %c0_64], %141 {strides = array<i32>} : memref<8x32xf32, #tpu.memory_space<vmem>>, vector<8x32xf32>,
    } else {
    }
    %c0 = arith.constant 0 : index
    %c0_1 = arith.constant 0 : index
    %3 = vector.load %arg15[%c0, %c0_1] : memref<8x32xf32, #tpu.memory_space<vmem>>, vector<8x32xf32>
    %c0_2 = arith.constant 0 : index
    %c0_3 = arith.constant 0 : index
    %c0_4 = arith.constant 0 : index
    %4 = vector.load %arg6[%c0_2, %c0_3, %c0_4] : memref<1x1x32xf32, #tpu.memory_space<vmem>>, vector<1x1x32xf32>
    %5 = vector.shape_cast %4 : vector<1x1x32xf32> to vector<1x32xf32>
    %c0_5 = arith.constant 0 : index
    %c0_6 = arith.constant 0 : index
    %c0_7 = arith.constant 0 : index
    %6 = vector.load %arg7[%c0_5, %c0_6, %c0_7] : memref<1x1x32xf32, #tpu.memory_space<vmem>>, vector<1x1x32xf32>
    %7 = vector.shape_cast %6 : vector<1x1x32xf32> to vector<1x32xf32>
    %cst = arith.constant dense<0.000000e+00> : vector<8xf32>
    %8 = vector.multi_reduction <add>, %3, %cst [1] : vector<8x32xf32> to vector<8xf32>
    %9 = vector.shape_cast %8 : vector<8xf32> to vector<8x1xf32>
    %cst_8 = arith.constant 3.200000e+01 : f32
    %10 = vector.broadcast %cst_8 : f32 to vector<8x1xf32>
    %11 = arith.divf %9, %10 : vector<8x1xf32>
    %12 = vector.broadcast %11 : vector<8x1xf32> to vector<8x32xf32>
    %13 = arith.subf %3, %12 : vector<8x32xf32>
    %14 = arith.mulf %13, %13 : vector<8x32xf32>
    %cst_9 = arith.constant dense<0.000000e+00> : vector<8xf32>
    %15 = vector.multi_reduction <add>, %14, %cst_9 [1] : vector<8x32xf32> to vector<8xf32>
    %16 = vector.shape_cast %15 : vector<8xf32> to vector<8x1xf32>
    %cst_10 = arith.constant 3.200000e+01 : f32
    %17 = vector.broadcast %cst_10 : f32 to vector<8x1xf32>
    %18 = arith.divf %16, %17 : vector<8x1xf32>
    %19 = vector.broadcast %11 : vector<8x1xf32> to vector<8x32xf32>
    %20 = arith.subf %3, %19 : vector<8x32xf32>
    %cst_11 = arith.constant 9.99999974E-6 : f32
    %21 = vector.broadcast %cst_11 : f32 to vector<8x1xf32>
    %22 = arith.addf %18, %21 : vector<8x1xf32>
    %23 = math.rsqrt %22 : vector<8x1xf32>
    %24 = vector.broadcast %23 : vector<8x1xf32> to vector<8x32xf32>
    %25 = arith.mulf %20, %24 : vector<8x32xf32>
    %26 = vector.broadcast %5 : vector<1x32xf32> to vector<8x32xf32>
    %27 = arith.mulf %25, %26 : vector<8x32xf32>
    %28 = vector.broadcast %7 : vector<1x32xf32> to vector<8x32xf32>
    %29 = arith.addf %27, %28 : vector<8x32xf32>
    %c0_12 = arith.constant 0 : index
    %c0_13 = arith.constant 0 : index
    %c0_14 = arith.constant 0 : index
    %30 = vector.load %arg3[%c0_12, %c0_13, %c0_14] : memref<1x32x96xf32, #tpu.memory_space<vmem>>, vector<1x32x96xf32>
    %31 = vector.shape_cast %30 : vector<1x32x96xf32> to vector<32x96xf32>
    %cst_15 = arith.constant dense<0.000000e+00> : vector<8x96xf32>
    %32 = tpu.matmul %29, %31, %cst_15 {dimension_numbers = #tpu.dot_dimension_numbers<[1], [0], [0], [1], [0, 0, 1, 1], [], []>} : vector<8x32xf32>, vector<32x96xf32>, vector<8x96xf32> -> vector<8x96xf32>
    %33 = vector.extract_strided_slice %32 {offsets = [0, 0], sizes = [8, 32], strides = [1, 1]} : vector<8x96xf32> to vector<8x32xf32>
    %cst_16 = arith.constant 0.176776692 : f32
    %34 = vector.broadcast %cst_16 : f32 to vector<8x32xf32>
    %35 = arith.mulf %33, %34 : vector<8x32xf32>
    %36 = vector.extract_strided_slice %35 {offsets = [0, 0], sizes = [8, 8], strides = [1, 1]} : vector<8x32xf32> to vector<8x8xf32>
    %37 = vector.extract_strided_slice %35 {offsets = [0, 8], sizes = [8, 8], strides = [1, 1]} : vector<8x32xf32> to vector<8x8xf32>
    %38 = vector.extract_strided_slice %35 {offsets = [0, 16], sizes = [8, 8], strides = [1, 1]} : vector<8x32xf32> to vector<8x8xf32>
    %39 = vector.extract_strided_slice %35 {offsets = [0, 24], sizes = [8, 8], strides = [1, 1]} : vector<8x32xf32> to vector<8x8xf32>
    %40 = vector.shape_cast %36 : vector<8x8xf32> to vector<1x8x8xf32>
    %41 = vector.shape_cast %37 : vector<8x8xf32> to vector<1x8x8xf32>
    %42 = vector.shape_cast %38 : vector<8x8xf32> to vector<1x8x8xf32>
    %43 = vector.shape_cast %39 : vector<8x8xf32> to vector<1x8x8xf32>
    %44 = tpu.concatenate %40, %41, %42, %43 in 0 : vector<1x8x8xf32>, vector<1x8x8xf32>, vector<1x8x8xf32>, vector<1x8x8xf32> -> vector<4x8x8xf32>
    %45 = vector.extract_strided_slice %32 {offsets = [0, 32], sizes = [8, 32], strides = [1, 1]} : vector<8x96xf32> to vector<8x32xf32>
    %46 = vector.extract_strided_slice %45 {offsets = [0, 0], sizes = [8, 8], strides = [1, 1]} : vector<8x32xf32> to vector<8x8xf32>
    %47 = vector.extract_strided_slice %45 {offsets = [0, 8], sizes = [8, 8], strides = [1, 1]} : vector<8x32xf32> to vector<8x8xf32>
    %48 = vector.extract_strided_slice %45 {offsets = [0, 16], sizes = [8, 8], strides = [1, 1]} : vector<8x32xf32> to vector<8x8xf32>
    %49 = vector.extract_strided_slice %45 {offsets = [0, 24], sizes = [8, 8], strides = [1, 1]} : vector<8x32xf32> to vector<8x8xf32>
    %50 = vector.shape_cast %46 : vector<8x8xf32> to vector<1x8x8xf32>
    %51 = vector.shape_cast %47 : vector<8x8xf32> to vector<1x8x8xf32>
    %52 = vector.shape_cast %48 : vector<8x8xf32> to vector<1x8x8xf32>
    %53 = vector.shape_cast %49 : vector<8x8xf32> to vector<1x8x8xf32>
    %54 = tpu.concatenate %50, %51, %52, %53 in 0 : vector<1x8x8xf32>, vector<1x8x8xf32>, vector<1x8x8xf32>, vector<1x8x8xf32> -> vector<4x8x8xf32>
    %55 = vector.extract_strided_slice %32 {offsets = [0, 64], sizes = [8, 32], strides = [1, 1]} : vector<8x96xf32> to vector<8x32xf32>
    %56 = vector.extract_strided_slice %55 {offsets = [0, 0], sizes = [8, 8], strides = [1, 1]} : vector<8x32xf32> to vector<8x8xf32>
    %57 = vector.extract_strided_slice %55 {offsets = [0, 8], sizes = [8, 8], strides = [1, 1]} : vector<8x32xf32> to vector<8x8xf32>
    %58 = vector.extract_strided_slice %55 {offsets = [0, 16], sizes = [8, 8], strides = [1, 1]} : vector<8x32xf32> to vector<8x8xf32>
    %59 = vector.extract_strided_slice %55 {offsets = [0, 24], sizes = [8, 8], strides = [1, 1]} : vector<8x32xf32> to vector<8x8xf32>
    %60 = vector.shape_cast %56 : vector<8x8xf32> to vector<1x8x8xf32>
    %61 = vector.shape_cast %57 : vector<8x8xf32> to vector<1x8x8xf32>
    %62 = vector.shape_cast %58 : vector<8x8xf32> to vector<1x8x8xf32>
    %63 = vector.shape_cast %59 : vector<8x8xf32> to vector<1x8x8xf32>
    %64 = tpu.concatenate %60, %61, %62, %63 in 0 : vector<1x8x8xf32>, vector<1x8x8xf32>, vector<1x8x8xf32>, vector<1x8x8xf32> -> vector<4x8x8xf32>
    "tpu.trace_start"() <{level = 10 : i32, message = "hnd,hmd->hnm"}> : () -> ()
    %cst_17 = arith.constant dense<0.000000e+00> : vector<4x8x8xf32>
    %65 = tpu.matmul %44, %54, %cst_17 {dimension_numbers = #tpu.dot_dimension_numbers<[2], [2], [1], [1], [0, 0, 0, 1, 1, 1], [0], [0]>} : vector<4x8x8xf32>, vector<4x8x8xf32>, vector<4x8x8xf32> -> vector<4x8x8xf32>
    "tpu.trace_stop"() : () -> ()
    %cst_18 = arith.constant dense<0xFF800000> : vector<4x8xf32>
    %66 = vector.multi_reduction <maximumf>, %65, %cst_18 [2] : vector<4x8x8xf32> to vector<4x8xf32>
    %67 = vector.shape_cast %66 : vector<4x8xf32> to vector<4x8x1xf32>
    %68 = vector.broadcast %67 : vector<4x8x1xf32> to vector<4x8x8xf32>
    %69 = arith.subf %65, %68 : vector<4x8x8xf32>
    %70 = math.exp %69 : vector<4x8x8xf32>
    %cst_19 = arith.constant dense<0.000000e+00> : vector<4x8xf32>
    %71 = vector.multi_reduction <add>, %70, %cst_19 [2] : vector<4x8x8xf32> to vector<4x8xf32>
    %72 = vector.shape_cast %71 : vector<4x8xf32> to vector<4x8x1xf32>
    %73 = vector.broadcast %72 : vector<4x8x1xf32> to vector<4x8x8xf32>
    %74 = arith.divf %70, %73 : vector<4x8x8xf32>
    "tpu.trace_start"() <{level = 10 : i32, message = "hnm,hmd->hnd"}> : () -> ()
    %cst_20 = arith.constant dense<0.000000e+00> : vector<4x8x8xf32>
    %75 = tpu.matmul %74, %64, %cst_20 {dimension_numbers = #tpu.dot_dimension_numbers<[2], [1], [1], [2], [0, 0, 0, 1, 1, 2], [0], [0]>} : vector<4x8x8xf32>, vector<4x8x8xf32>, vector<4x8x8xf32> -> vector<4x8x8xf32>
    "tpu.trace_stop"() : () -> ()
    %76 = vector.extract_strided_slice %75 {offsets = [0, 0, 0], sizes = [1, 8, 8], strides = [1, 1, 1]} : vector<4x8x8xf32> to vector<1x8x8xf32>
    %77 = vector.shape_cast %76 : vector<1x8x8xf32> to vector<8x8xf32>
    %78 = vector.extract_strided_slice %75 {offsets = [1, 0, 0], sizes = [1, 8, 8], strides = [1, 1, 1]} : vector<4x8x8xf32> to vector<1x8x8xf32>
    %79 = vector.shape_cast %78 : vector<1x8x8xf32> to vector<8x8xf32>
    %80 = vector.extract_strided_slice %75 {offsets = [2, 0, 0], sizes = [1, 8, 8], strides = [1, 1, 1]} : vector<4x8x8xf32> to vector<1x8x8xf32>
    %81 = vector.shape_cast %80 : vector<1x8x8xf32> to vector<8x8xf32>
    %82 = vector.extract_strided_slice %75 {offsets = [3, 0, 0], sizes = [1, 8, 8], strides = [1, 1, 1]} : vector<4x8x8xf32> to vector<1x8x8xf32>
    %83 = vector.shape_cast %82 : vector<1x8x8xf32> to vector<8x8xf32>
    %84 = tpu.concatenate %77, %79, %81, %83 in 1 : vector<8x8xf32>, vector<8x8xf32>, vector<8x8xf32>, vector<8x8xf32> -> vector<8x32xf32>
    %c0_21 = arith.constant 0 : index
    %c0_22 = arith.constant 0 : index
    %c0_23 = arith.constant 0 : index
    %85 = vector.load %arg4[%c0_21, %c0_22, %c0_23] : memref<1x32x32xf32, #tpu.memory_space<vmem>>, vector<1x32x32xf32>
    %86 = vector.shape_cast %85 : vector<1x32x32xf32> to vector<32x32xf32>
    %cst_24 = arith.constant dense<0.000000e+00> : vector<8x32xf32>
    %87 = tpu.matmul %84, %86, %cst_24 {dimension_numbers = #tpu.dot_dimension_numbers<[1], [0], [0], [1], [0, 0, 1, 1], [], []>} : vector<8x32xf32>, vector<32x32xf32>, vector<8x32xf32> -> vector<8x32xf32>
    %88 = arith.addf %3, %87 : vector<8x32xf32>
    %c0_25 = arith.constant 0 : index
    %c0_26 = arith.constant 0 : index
    %c0_27 = arith.constant 0 : index
    %89 = vector.load %arg5[%c0_25, %c0_26, %c0_27] : memref<1x1x32xf32, #tpu.memory_space<vmem>>, vector<1x1x32xf32>
    %90 = vector.shape_cast %89 : vector<1x1x32xf32> to vector<1x32xf32>
    %91 = vector.broadcast %90 : vector<1x32xf32> to vector<8x32xf32>
    %92 = arith.addf %88, %91 : vector<8x32xf32>
    %c0_28 = arith.constant 0 : index
    %c0_29 = arith.constant 0 : index
    %c0_30 = arith.constant 0 : index
    %93 = vector.load %arg12[%c0_28, %c0_29, %c0_30] : memref<1x1x32xf32, #tpu.memory_space<vmem>>, vector<1x1x32xf32>
    %94 = vector.shape_cast %93 : vector<1x1x32xf32> to vector<1x32xf32>
    %c0_31 = arith.constant 0 : index
    %c0_32 = arith.constant 0 : index
    %c0_33 = arith.constant 0 : index
    %95 = vector.load %arg13[%c0_31, %c0_32, %c0_33] : memref<1x1x32xf32, #tpu.memory_space<vmem>>, vector<1x1x32xf32>
    %96 = vector.shape_cast %95 : vector<1x1x32xf32> to vector<1x32xf32>
    %cst_34 = arith.constant dense<0.000000e+00> : vector<8xf32>
    %97 = vector.multi_reduction <add>, %92, %cst_34 [1] : vector<8x32xf32> to vector<8xf32>
    %98 = vector.shape_cast %97 : vector<8xf32> to vector<8x1xf32>
    %cst_35 = arith.constant 3.200000e+01 : f32
    %99 = vector.broadcast %cst_35 : f32 to vector<8x1xf32>
    %100 = arith.divf %98, %99 : vector<8x1xf32>
    %101 = vector.broadcast %100 : vector<8x1xf32> to vector<8x32xf32>
    %102 = arith.subf %92, %101 : vector<8x32xf32>
    %103 = arith.mulf %102, %102 : vector<8x32xf32>
    %cst_36 = arith.constant dense<0.000000e+00> : vector<8xf32>
    %104 = vector.multi_reduction <add>, %103, %cst_36 [1] : vector<8x32xf32> to vector<8xf32>
    %105 = vector.shape_cast %104 : vector<8xf32> to vector<8x1xf32>
    %cst_37 = arith.constant 3.200000e+01 : f32
    %106 = vector.broadcast %cst_37 : f32 to vector<8x1xf32>
    %107 = arith.divf %105, %106 : vector<8x1xf32>
    %108 = vector.broadcast %100 : vector<8x1xf32> to vector<8x32xf32>
    %109 = arith.subf %92, %108 : vector<8x32xf32>
    %cst_38 = arith.constant 9.99999974E-6 : f32
    %110 = vector.broadcast %cst_38 : f32 to vector<8x1xf32>
    %111 = arith.addf %107, %110 : vector<8x1xf32>
    %112 = math.rsqrt %111 : vector<8x1xf32>
    %113 = vector.broadcast %112 : vector<8x1xf32> to vector<8x32xf32>
    %114 = arith.mulf %109, %113 : vector<8x32xf32>
    %115 = vector.broadcast %94 : vector<1x32xf32> to vector<8x32xf32>
    %116 = arith.mulf %114, %115 : vector<8x32xf32>
    %117 = vector.broadcast %96 : vector<1x32xf32> to vector<8x32xf32>
    %118 = arith.addf %116, %117 : vector<8x32xf32>
    %c0_39 = arith.constant 0 : index
    %c0_40 = arith.constant 0 : index
    %c0_41 = arith.constant 0 : index
    %119 = vector.load %arg8[%c0_39, %c0_40, %c0_41] : memref<1x32x64xf32, #tpu.memory_space<vmem>>, vector<1x32x64xf32>
    %120 = vector.shape_cast %119 : vector<1x32x64xf32> to vector<32x64xf32>
    %cst_42 = arith.constant dense<0.000000e+00> : vector<8x64xf32>
    %121 = tpu.matmul %118, %120, %cst_42 {dimension_numbers = #tpu.dot_dimension_numbers<[1], [0], [0], [1], [0, 0, 1, 1], [], []>} : vector<8x32xf32>, vector<32x64xf32>, vector<8x64xf32> -> vector<8x64xf32>
    %c0_43 = arith.constant 0 : index
    %c0_44 = arith.constant 0 : index
    %c0_45 = arith.constant 0 : index
    %122 = vector.load %arg9[%c0_43, %c0_44, %c0_45] : memref<1x1x64xf32, #tpu.memory_space<vmem>>, vector<1x1x64xf32>
    %123 = vector.shape_cast %122 : vector<1x1x64xf32> to vector<1x64xf32>
    %124 = vector.broadcast %123 : vector<1x64xf32> to vector<8x64xf32>
    %125 = arith.addf %121, %124 : vector<8x64xf32>
    %cst_46 = arith.constant 0.000000e+00 : f32
    %126 = vector.broadcast %cst_46 : f32 to vector<8x64xf32>
    %127 = arith.maximumf %125, %126 : vector<8x64xf32>
    %c0_47 = arith.constant 0 : index
    %c0_48 = arith.constant 0 : index
    %c0_49 = arith.constant 0 : index
    %128 = vector.load %arg10[%c0_47, %c0_48, %c0_49] : memref<1x64x32xf32, #tpu.memory_space<vmem>>, vector<1x64x32xf32>
    %129 = vector.shape_cast %128 : vector<1x64x32xf32> to vector<64x32xf32>
    %cst_50 = arith.constant dense<0.000000e+00> : vector<8x32xf32>
    %130 = tpu.matmul %127, %129, %cst_50 {dimension_numbers = #tpu.dot_dimension_numbers<[1], [0], [0], [1], [0, 0, 1, 1], [], []>} : vector<8x64xf32>, vector<64x32xf32>, vector<8x32xf32> -> vector<8x32xf32>
    %131 = arith.addf %92, %130 : vector<8x32xf32>
    %c0_51 = arith.constant 0 : index
    %c0_52 = arith.constant 0 : index
    %c0_53 = arith.constant 0 : index
    %132 = vector.load %arg11[%c0_51, %c0_52, %c0_53] : memref<1x1x32xf32, #tpu.memory_space<vmem>>, vector<1x1x32xf32>
    %133 = vector.shape_cast %132 : vector<1x1x32xf32> to vector<1x32xf32>
    %134 = vector.broadcast %133 : vector<1x32xf32> to vector<8x32xf32>
    %135 = arith.addf %131, %134 : vector<8x32xf32>
    %c0_54 = arith.constant 0 : index
    %c0_55 = arith.constant 0 : index
    %136 = vector.load %arg15[%c0_54, %c0_55] : memref<8x32xf32, #tpu.memory_space<vmem>>, vector<8x32xf32>
    tpu.vector_store %arg15[%c0_54, %c0_55], %135 {strides = array<i32>} : memref<8x32xf32, #tpu.memory_space<vmem>>, vector<8x32xf32>,
    %c0_56 = arith.constant 0 : index
    %c0_57 = arith.constant 0 : index
    %c0_58 = arith.constant 0 : index
    %c0_59 = arith.constant 0 : index
    %137 = vector.load %arg14[%c0_56, %c0_57, %c0_58, %c0_59] : memref<1x1x8x32xf32, #tpu.memory_space<vmem>>, vector<1x1x8x32xf32>
    %138 = vector.shape_cast %137 : vector<1x1x8x32xf32> to vector<8x32xf32>
    %139 = vector.shape_cast %135 : vector<8x32xf32> to vector<1x1x8x32xf32>
    tpu.vector_store %arg14[%c0_56, %c0_57, %c0_58, %c0_59], %139 {strides = array<i32>} : memref<1x1x8x32xf32, #tpu.memory_space<vmem>>, vector<1x1x8x32xf32>,
    return
  }
  func.func @transform_0(%arg0: i32, %arg1: i32) -> (i32, i32, i32) {
    %c0_i32 = arith.constant 0 : i32
    %c0_i32_0 = arith.constant 0 : i32
    %c0_i32_1 = arith.constant 0 : i32
    return %arg0, %c0_i32, %c0_i32_0 : i32, i32, i32
  }
  func.func @transform_1(%arg0: i32, %arg1: i32) -> (i32, i32, i32) {
    %c0_i32 = arith.constant 0 : i32
    %c0_i32_0 = arith.constant 0 : i32
    %c0_i32_1 = arith.constant 0 : i32
    return %arg1, %c0_i32, %c0_i32_0 : i32, i32, i32
  }
  func.func @transform_2(%arg0: i32, %arg1: i32) -> (i32, i32, i32) {
    %c0_i32 = arith.constant 0 : i32
    %c0_i32_0 = arith.constant 0 : i32
    %c0_i32_1 = arith.constant 0 : i32
    return %arg1, %c0_i32, %c0_i32_0 : i32, i32, i32
  }
  func.func @transform_3(%arg0: i32, %arg1: i32) -> (i32, i32, i32) {
    %c0_i32 = arith.constant 0 : i32
    %c0_i32_0 = arith.constant 0 : i32
    %c0_i32_1 = arith.constant 0 : i32
    return %arg1, %c0_i32, %c0_i32_0 : i32, i32, i32
  }
  func.func @transform_4(%arg0: i32, %arg1: i32) -> (i32, i32, i32) {
    %c0_i32 = arith.constant 0 : i32
    %c0_i32_0 = arith.constant 0 : i32
    %c0_i32_1 = arith.constant 0 : i32
    return %arg1, %c0_i32, %c0_i32_0 : i32, i32, i32
  }
  func.func @transform_5(%arg0: i32, %arg1: i32) -> (i32, i32, i32) {
    %c0_i32 = arith.constant 0 : i32
    %c0_i32_0 = arith.constant 0 : i32
    %c0_i32_1 = arith.constant 0 : i32
    return %arg1, %c0_i32, %c0_i32_0 : i32, i32, i32
  }
  func.func @transform_6(%arg0: i32, %arg1: i32) -> (i32, i32, i32) {
    %c0_i32 = arith.constant 0 : i32
    %c0_i32_0 = arith.constant 0 : i32
    %c0_i32_1 = arith.constant 0 : i32
    return %arg1, %c0_i32, %c0_i32_0 : i32, i32, i32
  }
  func.func @transform_7(%arg0: i32, %arg1: i32) -> (i32, i32, i32) {
    %c0_i32 = arith.constant 0 : i32
    %c0_i32_0 = arith.constant 0 : i32
    %c0_i32_1 = arith.constant 0 : i32
    return %arg1, %c0_i32, %c0_i32_0 : i32, i32, i32
  }
  func.func @transform_8(%arg0: i32, %arg1: i32) -> (i32, i32, i32) {
    %c0_i32 = arith.constant 0 : i32
    %c0_i32_0 = arith.constant 0 : i32
    %c0_i32_1 = arith.constant 0 : i32
    return %arg1, %c0_i32, %c0_i32_0 : i32, i32, i32
  }
  func.func @transform_9(%arg0: i32, %arg1: i32) -> (i32, i32, i32) {
    %c0_i32 = arith.constant 0 : i32
    %c0_i32_0 = arith.constant 0 : i32
    %c0_i32_1 = arith.constant 0 : i32
    return %arg1, %c0_i32, %c0_i32_0 : i32, i32, i32
  }
  func.func @transform_10(%arg0: i32, %arg1: i32) -> (i32, i32, i32) {
    %c0_i32 = arith.constant 0 : i32
    %c0_i32_0 = arith.constant 0 : i32
    %c0_i32_1 = arith.constant 0 : i32
    return %arg1, %c0_i32, %c0_i32_0 : i32, i32, i32
  }
  func.func @transform_11(%arg0: i32, %arg1: i32) -> (i32, i32, i32) {
    %c0_i32 = arith.constant 0 : i32
    %c0_i32_0 = arith.constant 0 : i32
    %c0_i32_1 = arith.constant 0 : i32
    return %arg1, %c0_i32, %c0_i32_0 : i32, i32, i32
  }
  func.func @transform_12(%arg0: i32, %arg1: i32) -> (i32, i32, i32, i32) {
    %c0_i32 = arith.constant 0 : i32
    %c0_i32_0 = arith.constant 0 : i32
    %c0_i32_1 = arith.constant 0 : i32
    return %arg1, %arg0, %c0_i32, %c0_i32_0 : i32, i32, i32, i32
  }
}

</mosaic_0001>

<llo_original>
// kernel: tpu_custom_call.1
$region0: #{tpu_custom_call.1}
  #allocation0 [shape = 'u32[]', space=smem, size = 0x4, offset = 0x4, fixed_abs, tag = 'smem constant byte address 0x4 - core index']
  #allocation1 [shape = 'u32[72,128]{1,0:T(1,128)}', space=vmem, size = 0x9000, scoped, tag = 'internal scratch']
  #allocation2 [shape = 'f32[8,32]{1,0:T(8,128)}', space=vmem, size = 0x1000, scoped, tag = 'scratch operand']
  %s0 = inlined_call_operand.hbm [shape: f32[2,8,32], index: 0, kind: input, shape index: {}]
  %s1 = inlined_call_operand.vmem [shape: f32[2,32,96], index: 1, kind: input, shape index: {}]
  %s2 = inlined_call_operand.vmem [shape: f32[2,32,32], index: 2, kind: input, shape index: {}]
  %s3 = inlined_call_operand.vmem [shape: f32[2,1,32], index: 3, kind: input, shape index: {}]
  %s4 = inlined_call_operand.hbm [shape: f32[2,1,32], index: 4, kind: input, shape index: {}]
  %s5 = inlined_call_operand.hbm [shape: f32[2,1,32], index: 5, kind: input, shape index: {}]
  %s6 = inlined_call_operand.vmem [shape: f32[2,32,64], index: 6, kind: input, shape index: {}]
  %s7 = inlined_call_operand.vmem [shape: f32[2,1,64], index: 7, kind: input, shape index: {}]
  %s8 = inlined_call_operand.vmem [shape: f32[2,64,32], index: 8, kind: input, shape index: {}]
  %s9 = inlined_call_operand.vmem [shape: f32[2,1,32], index: 9, kind: input, shape index: {}]
  %s10 = inlined_call_operand.vmem [shape: f32[2,1,32], index: 10, kind: input, shape index: {}]
  %s11 = inlined_call_operand.hbm [shape: f32[2,1,32], index: 11, kind: input, shape index: {}]
  %s12 = inlined_call_operand.hbm [shape: f32[2,2,8,32], index: 12, kind: output, shape index: {}]
  %s13 = sld [smem:[#allocation0]]
  $region101: #{tpu_custom_call.1} parent=0
    _
  %s15 = ssub.s32 1, %s13
  %s16 = scalar_select 0, %s15, %s13
  $region1: #{tpu_custom_call.1} parent=0
    #allocation3 [shape = 'u8[8192]{0}', space=vmem, size = 0x2000, scoped, tag = 'input window, operand 0']
    #allocation4 [shape = 's32[2]{0}', space=sflag, size = 0x8, scoped, tag = 'scoped memory for tpu_custom_call.1']
    #allocation5 [shape = 's32[2]{0}', space=sflag, size = 0x8, scoped, tag = 'scoped memory for tpu_custom_call.1']
    #allocation6 [shape = 'u8[1024]{0}', space=vmem, size = 0x400, scoped, tag = 'input window, operand 4']
    #allocation7 [shape = 's32[2]{0}', space=sflag, size = 0x8, scoped, tag = 'scoped memory for tpu_custom_call.1']
    #allocation8 [shape = 'u8[1024]{0}', space=vmem, size = 0x400, scoped, tag = 'input window, operand 5']
    #allocation9 [shape = 'u8[1024]{0}', space=vmem, size = 0x400, scoped, tag = 'input window, operand 11']
    #allocation10 [shape = 's32[2]{0}', space=sflag, size = 0x8, scoped, tag = 'scoped memory for tpu_custom_call.1']
    #allocation11 [shape = 'u8[8192]{0}', space=vmem, size = 0x2000, scoped, tag = 'output window, operand 0']
    %17 = vsyncpa [#allocation4], 0
    %s18 = scalar_lea.sflag [#allocation4], 1
    %19 = vsyncpa %s18, 0
    %20 = vsyncpa [#allocation7], 0
    %s21 = scalar_lea.sflag [#allocation7], 1
    %22 = vsyncpa %s21, 0
    %23 = vsyncpa [#allocation10], 0
    %s24 = scalar_lea.sflag [#allocation10], 1
    %25 = vsyncpa %s24, 0
    %26 = vsyncpa [#allocation5], 0
    %s27 = scalar_lea.sflag [#allocation5], 1
    %28 = vsyncpa %s27, 0
    loop: start=0, step=1, limit=6
    $region2: #{tpu_custom_call.1} parent=1 // loop_pre_header
      _
    $region3: #{tpu_custom_call.1} parent=1 // loop_header
      %s30 = sphi 0, %s34
      %p31 = scmp.ge.s32.totalorder %s30, 6
      %s37 = sphi 0, %s49
      %s38 = sphi 0, %s45
      %s39 = sphi 0, %s37
      %s40 = sphi 0, %s38
      %s41 = sphi 0, %s39
      %s42 = sphi 0, %s40
      %s52 = sphi 0, %s54
      %s55 = sphi 0, %s52
      %s56 = sphi 0, %s55
      %s72 = sphi 0, %s56
      %s78 = sphi 0, %s80
      %s81 = sphi 0, %s78
      %s82 = sphi 0, %s81
      %s98 = sphi 0, %s82
      %s104 = sphi 0, %s106
      %s107 = sphi 0, %s104
      %s108 = sphi 0, %s107
      %s124 = sphi 0, %s108
      %s130 = sphi 0, %s132
      %s133 = sphi 0, %s130
      %s134 = sphi 0, %s133
      %s150 = sphi 0, %s134
      %s156 = sphi 0, %s158
      %s159 = sphi 0, %s156
      %s160 = sphi 0, %s159
      %s176 = sphi 0, %s160
      %s182 = sphi 0, %s184
      %s185 = sphi 0, %s182
      %s186 = sphi 0, %s185
      %s202 = sphi 0, %s186
      %s208 = sphi 0, %s210
      %s211 = sphi 0, %s208
      %s212 = sphi 0, %s211
      %s228 = sphi 0, %s212
      %s234 = sphi 0, %s236
      %s237 = sphi 0, %s234
      %s238 = sphi 0, %s237
      %s254 = sphi 0, %s238
      %s260 = sphi 0, %s262
      %s263 = sphi 0, %s260
      %s264 = sphi 0, %s263
      %s280 = sphi 0, %s264
      %s286 = sphi 0, %s288
      %s289 = sphi 0, %s286
      %s290 = sphi 0, %s289
      %s306 = sphi 0, %s290
      %s312 = sphi 0, %s314
      %s315 = sphi 0, %s312
      %s316 = sphi 0, %s315
      %s332 = sphi 0, %s316
      %s338 = sphi 0, %s340
      %s341 = sphi 0, %s338
      %s342 = sphi 0, %s341
      %s358 = sphi 0, %s342
      %s366 = sphi 0, %s368
      %s369 = sphi 0, %s366
      %s370 = sphi 0, %s369
      %s386 = sphi 0, %s370
    $region4: #{tpu_custom_call.1} parent=1 // loop_header_branch
      %33 = sbr.rel (%p31) target = $region8
    $region5: #{tpu_custom_call.1} parent=1 // loop_body
      %s35 = ssub.s32 %s30, 1
      %s36 = ssub.s32 %s30, 2
      %s43 = sadd.s32 1, %s38
      %p44 = scmp.ge.s32.totalorder %s43, 2
      %s45 = scalar_select %p44, 0, %s43
      %s46 = sadd.s32 1, %s37
      %s47 = scalar_select %p44, %s46, %s37
      %p48 = scmp.ge.s32.totalorder %s47, 2
      %s49 = scalar_select %p48, 0, %s47
      %s50 = ssub.s32 %s37, %s49
      %p51 = scmp.eq.s32.totalorder %s50, 0
      %s53 = sadd.s32 %s52, 1
      %s54 = scalar_select %p51, %s52, %s53
      %p57 = pneg %p51
      %p58 = scmp.eq.s32.totalorder %s30, 3
      %p59 = por %p57, %p58
      %p60 = scmp.ne.s32.totalorder %s52, %s55
      %p61 = scmp.eq.s32.totalorder %s30, 0
      %p62 = por %p60, %p61
      %p63 = scmp.ne.s32.totalorder %s52, %s55
      %p64 = scmp.eq.s32.totalorder %s35, 3
      %p65 = por %p63, %p64
      %p66 = scmp.ne.s32.totalorder %s55, %s56
      %p67 = scmp.eq.s32.totalorder %s35, 0
      %p68 = por %p66, %p67
      %p69 = scmp.ne.s32.totalorder %s55, %s56
      %p70 = scmp.eq.s32.totalorder %s36, 3
      %p71 = por %p69, %p70
      %p73 = scmp.ne.s32.totalorder %s56, %s72
      %p74 = scmp.eq.s32.totalorder %s36, 0
      %p75 = por %p73, %p74
      %s76 = ssub.s32 %s38, %s45
      %p77 = scmp.eq.s32.totalorder %s76, 0
      %s79 = sadd.s32 %s78, 1
      %s80 = scalar_select %p77, %s78, %s79
      %p83 = pneg %p77
      %p84 = scmp.eq.s32.totalorder %s30, 3
      %p85 = por %p83, %p84
      %p86 = scmp.ne.s32.totalorder %s78, %s81
      %p87 = scmp.eq.s32.totalorder %s30, 0
      %p88 = por %p86, %p87
      %p89 = scmp.ne.s32.totalorder %s78, %s81
      %p90 = scmp.eq.s32.totalorder %s35, 3
      %p91 = por %p89, %p90
      %p92 = scmp.ne.s32.totalorder %s81, %s82
      %p93 = scmp.eq.s32.totalorder %s35, 0
      %p94 = por %p92, %p93
      %p95 = scmp.ne.s32.totalorder %s81, %s82
      %p96 = scmp.eq.s32.totalorder %s36, 3
      %p97 = por %p95, %p96
      %p99 = scmp.ne.s32.totalorder %s82, %s98
      %p100 = scmp.eq.s32.totalorder %s36, 0
      %p101 = por %p99, %p100
      %s102 = ssub.s32 %s38, %s45
      %p103 = scmp.eq.s32.totalorder %s102, 0
      %s105 = sadd.s32 %s104, 1
      %s106 = scalar_select %p103, %s104, %s105
      %p109 = pneg %p103
      %p110 = scmp.eq.s32.totalorder %s30, 3
      %p111 = por %p109, %p110
      %p112 = scmp.ne.s32.totalorder %s104, %s107
      %p113 = scmp.eq.s32.totalorder %s30, 0
      %p114 = por %p112, %p113
      %p115 = scmp.ne.s32.totalorder %s104, %s107
      %p116 = scmp.eq.s32.totalorder %s35, 3
      %p117 = por %p115, %p116
      %p118 = scmp.ne.s32.totalorder %s107, %s108
      %p119 = scmp.eq.s32.totalorder %s35, 0
      %p120 = por %p118, %p119
      %p121 = scmp.ne.s32.totalorder %s107, %s108
      %p122 = scmp.eq.s32.totalorder %s36, 3
      %p123 = por %p121, %p122
      %p125 = scmp.ne.s32.totalorder %s108, %s124
      %p126 = scmp.eq.s32.totalorder %s36, 0
      %p127 = por %p125, %p126
      %s128 = ssub.s32 %s38, %s45
      %p129 = scmp.eq.s32.totalorder %s128, 0
      %s131 = sadd.s32 %s130, 1
      %s132 = scalar_select %p129, %s130, %s131
      %p135 = pneg %p129
      %p136 = scmp.eq.s32.totalorder %s30, 3
      %p137 = por %p135, %p136
      %p138 = scmp.ne.s32.totalorder %s130, %s133
      %p139 = scmp.eq.s32.totalorder %s30, 0
      %p140 = por %p138, %p139
      %p141 = scmp.ne.s32.totalorder %s130, %s133
      %p142 = scmp.eq.s32.totalorder %s35, 3
      %p143 = por %p141, %p142
      %p144 = scmp.ne.s32.totalorder %s133, %s134
      %p145 = scmp.eq.s32.totalorder %s35, 0
      %p146 = por %p144, %p145
      %p147 = scmp.ne.s32.totalorder %s133, %s134
      %p148 = scmp.eq.s32.totalorder %s36, 3
      %p149 = por %p147, %p148
      %p151 = scmp.ne.s32.totalorder %s134, %s150
      %p152 = scmp.eq.s32.totalorder %s36, 0
      %p153 = por %p151, %p152
      %s154 = ssub.s32 %s38, %s45
      %p155 = scmp.eq.s32.totalorder %s154, 0
      %s157 = sadd.s32 %s156, 1
      %s158 = scalar_select %p155, %s156, %s157
      %p161 = pneg %p155
      %p162 = scmp.eq.s32.totalorder %s30, 3
      %p163 = por %p161, %p162
      %p164 = scmp.ne.s32.totalorder %s156, %s159
      %p165 = scmp.eq.s32.totalorder %s30, 0
      %p166 = por %p164, %p165
      %p167 = scmp.ne.s32.totalorder %s156, %s159
      %p168 = scmp.eq.s32.totalorder %s35, 3
      %p169 = por %p167, %p168
      %p170 = scmp.ne.s32.totalorder %s159, %s160
      %p171 = scmp.eq.s32.totalorder %s35, 0
      %p172 = por %p170, %p171
      %p173 = scmp.ne.s32.totalorder %s159, %s160
      %p174 = scmp.eq.s32.totalorder %s36, 3
      %p175 = por %p173, %p174
      %p177 = scmp.ne.s32.totalorder %s160, %s176
      %p178 = scmp.eq.s32.totalorder %s36, 0
      %p179 = por %p177, %p178
      %s180 = ssub.s32 %s38, %s45
      %p181 = scmp.eq.s32.totalorder %s180, 0
      %s183 = sadd.s32 %s182, 1
      %s184 = scalar_select %p181, %s182, %s183
      %p187 = pneg %p181
      %p188 = scmp.eq.s32.totalorder %s30, 3
      %p189 = por %p187, %p188
      %p190 = scmp.ne.s32.totalorder %s182, %s185
      %p191 = scmp.eq.s32.totalorder %s30, 0
      %p192 = por %p190, %p191
      %p193 = scmp.ne.s32.totalorder %s182, %s185
      %p194 = scmp.eq.s32.totalorder %s35, 3
      %p195 = por %p193, %p194
      %p196 = scmp.ne.s32.totalorder %s185, %s186
      %p197 = scmp.eq.s32.totalorder %s35, 0
      %p198 = por %p196, %p197
      %p199 = scmp.ne.s32.totalorder %s185, %s186
      %p200 = scmp.eq.s32.totalorder %s36, 3
      %p201 = por %p199, %p200
      %p203 = scmp.ne.s32.totalorder %s186, %s202
      %p204 = scmp.eq.s32.totalorder %s36, 0
      %p205 = por %p203, %p204
      %s206 = ssub.s32 %s38, %s45
      %p207 = scmp.eq.s32.totalorder %s206, 0
      %s209 = sadd.s32 %s208, 1
      %s210 = scalar_select %p207, %s208, %s209
      %p213 = pneg %p207
      %p214 = scmp.eq.s32.totalorder %s30, 3
      %p215 = por %p213, %p214
      %p216 = scmp.ne.s32.totalorder %s208, %s211
      %p217 = scmp.eq.s32.totalorder %s30, 0
      %p218 = por %p216, %p217
      %p219 = scmp.ne.s32.totalorder %s208, %s211
      %p220 = scmp.eq.s32.totalorder %s35, 3
      %p221 = por %p219, %p220
      %p222 = scmp.ne.s32.totalorder %s211, %s212
      %p223 = scmp.eq.s32.totalorder %s35, 0
      %p224 = por %p222, %p223
      %p225 = scmp.ne.s32.totalorder %s211, %s212
      %p226 = scmp.eq.s32.totalorder %s36, 3
      %p227 = por %p225, %p226
      %p229 = scmp.ne.s32.totalorder %s212, %s228
      %p230 = scmp.eq.s32.totalorder %s36, 0
      %p231 = por %p229, %p230
      %s232 = ssub.s32 %s38, %s45
      %p233 = scmp.eq.s32.totalorder %s232, 0
      %s235 = sadd.s32 %s234, 1
      %s236 = scalar_select %p233, %s234, %s235
      %p239 = pneg %p233
      %p240 = scmp.eq.s32.totalorder %s30, 3
      %p241 = por %p239, %p240
      %p242 = scmp.ne.s32.totalorder %s234, %s237
      %p243 = scmp.eq.s32.totalorder %s30, 0
      %p244 = por %p242, %p243
      %p245 = scmp.ne.s32.totalorder %s234, %s237
      %p246 = scmp.eq.s32.totalorder %s35, 3
      %p247 = por %p245, %p246
      %p248 = scmp.ne.s32.totalorder %s237, %s238
      %p249 = scmp.eq.s32.totalorder %s35, 0
      %p250 = por %p248, %p249
      %p251 = scmp.ne.s32.totalorder %s237, %s238
      %p252 = scmp.eq.s32.totalorder %s36, 3
      %p253 = por %p251, %p252
      %p255 = scmp.ne.s32.totalorder %s238, %s254
      %p256 = scmp.eq.s32.totalorder %s36, 0
      %p257 = por %p255, %p256
      %s258 = ssub.s32 %s38, %s45
      %p259 = scmp.eq.s32.totalorder %s258, 0
      %s261 = sadd.s32 %s260, 1
      %s262 = scalar_select %p259, %s260, %s261
      %p265 = pneg %p259
      %p266 = scmp.eq.s32.totalorder %s30, 3
      %p267 = por %p265, %p266
      %p268 = scmp.ne.s32.totalorder %s260, %s263
      %p269 = scmp.eq.s32.totalorder %s30, 0
      %p270 = por %p268, %p269
      %p271 = scmp.ne.s32.totalorder %s260, %s263
      %p272 = scmp.eq.s32.totalorder %s35, 3
      %p273 = por %p271, %p272
      %p274 = scmp.ne.s32.totalorder %s263, %s264
      %p275 = scmp.eq.s32.totalorder %s35, 0
      %p276 = por %p274, %p275
      %p277 = scmp.ne.s32.totalorder %s263, %s264
      %p278 = scmp.eq.s32.totalorder %s36, 3
      %p279 = por %p277, %p278
      %p281 = scmp.ne.s32.totalorder %s264, %s280
      %p282 = scmp.eq.s32.totalorder %s36, 0
      %p283 = por %p281, %p282
      %s284 = ssub.s32 %s38, %s45
      %p285 = scmp.eq.s32.totalorder %s284, 0
      %s287 = sadd.s32 %s286, 1
      %s288 = scalar_select %p285, %s286, %s287
      %p291 = pneg %p285
      %p292 = scmp.eq.s32.totalorder %s30, 3
      %p293 = por %p291, %p292
      %p294 = scmp.ne.s32.totalorder %s286, %s289
      %p295 = scmp.eq.s32.totalorder %s30, 0
      %p296 = por %p294, %p295
      %p297 = scmp.ne.s32.totalorder %s286, %s289
      %p298 = scmp.eq.s32.totalorder %s35, 3
      %p299 = por %p297, %p298
      %p300 = scmp.ne.s32.totalorder %s289, %s290
      %p301 = scmp.eq.s32.totalorder %s35, 0
      %p302 = por %p300, %p301
      %p303 = scmp.ne.s32.totalorder %s289, %s290
      %p304 = scmp.eq.s32.totalorder %s36, 3
      %p305 = por %p303, %p304
      %p307 = scmp.ne.s32.totalorder %s290, %s306
      %p308 = scmp.eq.s32.totalorder %s36, 0
      %p309 = por %p307, %p308
      %s310 = ssub.s32 %s38, %s45
      %p311 = scmp.eq.s32.totalorder %s310, 0
      %s313 = sadd.s32 %s312, 1
      %s314 = scalar_select %p311, %s312, %s313
      %p317 = pneg %p311
      %p318 = scmp.eq.s32.totalorder %s30, 3
      %p319 = por %p317, %p318
      %p320 = scmp.ne.s32.totalorder %s312, %s315
      %p321 = scmp.eq.s32.totalorder %s30, 0
      %p322 = por %p320, %p321
      %p323 = scmp.ne.s32.totalorder %s312, %s315
      %p324 = scmp.eq.s32.totalorder %s35, 3
      %p325 = por %p323, %p324
      %p326 = scmp.ne.s32.totalorder %s315, %s316
      %p327 = scmp.eq.s32.totalorder %s35, 0
      %p328 = por %p326, %p327
      %p329 = scmp.ne.s32.totalorder %s315, %s316
      %p330 = scmp.eq.s32.totalorder %s36, 3
      %p331 = por %p329, %p330
      %p333 = scmp.ne.s32.totalorder %s316, %s332
      %p334 = scmp.eq.s32.totalorder %s36, 0
      %p335 = por %p333, %p334
      %s336 = ssub.s32 %s38, %s45
      %p337 = scmp.eq.s32.totalorder %s336, 0
      %s339 = sadd.s32 %s338, 1
      %s340 = scalar_select %p337, %s338, %s339
      %p343 = pneg %p337
      %p344 = scmp.eq.s32.totalorder %s30, 3
      %p345 = por %p343, %p344
      %p346 = scmp.ne.s32.totalorder %s338, %s341
      %p347 = scmp.eq.s32.totalorder %s30, 0
      %p348 = por %p346, %p347
      %p349 = scmp.ne.s32.totalorder %s338, %s341
      %p350 = scmp.eq.s32.totalorder %s35, 3
      %p351 = por %p349, %p350
      %p352 = scmp.ne.s32.totalorder %s341, %s342
      %p353 = scmp.eq.s32.totalorder %s35, 0
      %p354 = por %p352, %p353
      %p355 = scmp.ne.s32.totalorder %s341, %s342
      %p356 = scmp.eq.s32.totalorder %s36, 3
      %p357 = por %p355, %p356
      %p359 = scmp.ne.s32.totalorder %s342, %s358
      %p360 = scmp.eq.s32.totalorder %s36, 0
      %p361 = por %p359, %p360
      %s362 = ssub.s32 %s38, %s45
      %s363 = ssub.s32 %s37, %s49
      %s364 = sor.u32 %s362, %s363
      %p365 = scmp.eq.s32.totalorder %s364, 0
      %s367 = sadd.s32 %s366, 1
      %s368 = scalar_select %p365, %s366, %s367
      %p371 = pneg %p365
      %p372 = scmp.eq.s32.totalorder %s30, 3
      %p373 = por %p371, %p372
      %p374 = scmp.ne.s32.totalorder %s366, %s369
      %p375 = scmp.eq.s32.totalorder %s30, 0
      %p376 = por %p374, %p375
      %p377 = scmp.ne.s32.totalorder %s366, %s369
      %p378 = scmp.eq.s32.totalorder %s35, 3
      %p379 = por %p377, %p378
      %p380 = scmp.ne.s32.totalorder %s369, %s370
      %p381 = scmp.eq.s32.totalorder %s35, 0
      %p382 = por %p380, %p381
      %p383 = scmp.ne.s32.totalorder %s369, %s370
      %p384 = scmp.eq.s32.totalorder %s36, 3
      %p385 = por %p383, %p384
      %p387 = scmp.ne.s32.totalorder %s370, %s386
      %p388 = scmp.eq.s32.totalorder %s36, 0
      %p389 = por %p387, %p388
      %p390 = scmp.le.s32.totalorder 1, %s30
      %p391 = scmp.lt.s32.totalorder %s30, 5
      %p392 = pnand %p390, %p391
      %p393 = pneg %p392
      // Predicated region
      $region9: #{tpu_custom_call.1} parent=5 // pred_check
        _
      $region10: #{tpu_custom_call.1} parent=5 // pred_check_branch
        %395 = sbr.rel (%p392) target = $region12
      $region11: #{tpu_custom_call.1} parent=5 // pred_region
        %s396 = ssub.s32 %s30, 1
      $region12: #{tpu_custom_call.1} parent=5 // pred_fallthru
        _
      %p397 = scmp.lt.s32.totalorder %s30, 4
      // Predicated region
      $region13: #{tpu_custom_call.1} parent=5 // pred_check
        %p398 = pneg %p397
      $region14: #{tpu_custom_call.1} parent=5 // pred_check_branch
        %400 = sbr.rel (%p398) target = $region16
      $region15: #{tpu_custom_call.1} parent=5 // pred_region
        // Predicated region
        $region17: #{tpu_custom_call.1} parent=15 // pred_check
          %p401 = pneg %p62
        $region18: #{tpu_custom_call.1} parent=15 // pred_check_branch
          %403 = sbr.rel (%p401) target = $region20
        $region19: #{tpu_custom_call.1} parent=15 // pred_region
          %s404 = sand.u32 %s52, 1
          %s405 = scalar_lea.sflag [#allocation4], %s404
          %s406 = sand.u32 %s52, 1
          %s407 = smul.addr %s406, 8
          %s408 = scalar_lea.vmem [#allocation3], %s407
          %410 = vsyncadd %s405, 0
          %s411 = smul.addr %s37, 8
          %s412 = scalar_lea.hbm %s0, %s411
          %s414 = sshll.u32 %s412, 4
          %s415 = int_to_ptr.hbm [resolvable:$true] %s414
          %s416 = sshll.u32 %s408, 4
          %s417 = int_to_ptr.vmem [resolvable:$true] %s416
          %419 = dma.hbm_to_vmem [thread:$0]  %s415, 128, %s417, %s405
        $region20: #{tpu_custom_call.1} parent=15 // pred_fallthru
          _
        // Predicated region
        $region21: #{tpu_custom_call.1} parent=15 // pred_check
          %p420 = pneg %p88
        $region22: #{tpu_custom_call.1} parent=15 // pred_check_branch
          %422 = sbr.rel (%p420) target = $region24
        $region23: #{tpu_custom_call.1} parent=15 // pred_region
          %p423 = scmp.lt.s32.totalorder %s38, 1
          %s424 = scalar_select %p423, %s38, 1
          %s425 = smul.addr %s424, 4
          %s426 = smul.addr %s425, 8
          %s427 = scalar_lea.vmem %s1, %s426
        $region24: #{tpu_custom_call.1} parent=15 // pred_fallthru
          _
        // Predicated region
        $region25: #{tpu_custom_call.1} parent=15 // pred_check
          %p428 = pneg %p114
        $region26: #{tpu_custom_call.1} parent=15 // pred_check_branch
          %430 = sbr.rel (%p428) target = $region28
        $region27: #{tpu_custom_call.1} parent=15 // pred_region
          %p431 = scmp.lt.s32.totalorder %s38, 1
          %s432 = scalar_select %p431, %s38, 1
          %s433 = smul.addr %s432, 4
          %s434 = smul.addr %s433, 8
          %s435 = scalar_lea.vmem %s2, %s434
        $region28: #{tpu_custom_call.1} parent=15 // pred_fallthru
          _
        // Predicated region
        $region29: #{tpu_custom_call.1} parent=15 // pred_check
          %p436 = pneg %p140
        $region30: #{tpu_custom_call.1} parent=15 // pred_check_branch
          %438 = sbr.rel (%p436) target = $region32
        $region31: #{tpu_custom_call.1} parent=15 // pred_region
          %p439 = scmp.lt.s32.totalorder %s38, 1
          %s440 = scalar_select %p439, %s38, 1
          %s441 = scalar_lea.vmem %s3, %s440
        $region32: #{tpu_custom_call.1} parent=15 // pred_fallthru
          _
        // Predicated region
        $region33: #{tpu_custom_call.1} parent=15 // pred_check
          %p442 = pneg %p166
        $region34: #{tpu_custom_call.1} parent=15 // pred_check_branch
          %444 = sbr.rel (%p442) target = $region36
        $region35: #{tpu_custom_call.1} parent=15 // pred_region
          %s445 = sand.u32 %s30, 1
          %s446 = scalar_lea.sflag [#allocation7], %s445
          %s447 = sand.u32 %s156, 1
          %s448 = scalar_lea.vmem [#allocation6], %s447
          %450 = vsyncadd %s446, 0
          %s451 = scalar_lea.hbm %s4, %s38
          %s453 = sshll.u32 %s451, 4
          %s454 = int_to_ptr.hbm [resolvable:$true] %s453
          %s455 = sshll.u32 %s448, 4
          %s456 = int_to_ptr.vmem [resolvable:$true] %s455
          %458 = dma.hbm_to_vmem [thread:$0]  %s454, 16, %s456, %s446
        $region36: #{tpu_custom_call.1} parent=15 // pred_fallthru
          _
        // Predicated region
        $region37: #{tpu_custom_call.1} parent=15 // pred_check
          %p459 = pneg %p192
        $region38: #{tpu_custom_call.1} parent=15 // pred_check_branch
          %461 = sbr.rel (%p459) target = $region40
        $region39: #{tpu_custom_call.1} parent=15 // pred_region
          %s462 = sand.u32 %s30, 1
          %s463 = scalar_lea.sflag [#allocation7], %s462
          %s464 = sand.u32 %s182, 1
          %s465 = scalar_lea.vmem [#allocation8], %s464
          %467 = vsyncadd %s463, 0
          %s468 = scalar_lea.hbm %s5, %s38
          %s470 = sshll.u32 %s468, 4
          %s471 = int_to_ptr.hbm [resolvable:$true] %s470
          %s472 = sshll.u32 %s465, 4
          %s473 = int_to_ptr.vmem [resolvable:$true] %s472
          %475 = dma.hbm_to_vmem [thread:$0]  %s471, 16, %s473, %s463
        $region40: #{tpu_custom_call.1} parent=15 // pred_fallthru
          _
        // Predicated region
        $region41: #{tpu_custom_call.1} parent=15 // pred_check
          %p476 = pneg %p218
        $region42: #{tpu_custom_call.1} parent=15 // pred_check_branch
          %478 = sbr.rel (%p476) target = $region44
        $region43: #{tpu_custom_call.1} parent=15 // pred_region
          %p479 = scmp.lt.s32.totalorder %s38, 1
          %s480 = scalar_select %p479, %s38, 1
          %s481 = smul.addr %s480, 4
          %s482 = smul.addr %s481, 8
          %s483 = scalar_lea.vmem %s6, %s482
        $region44: #{tpu_custom_call.1} parent=15 // pred_fallthru
          _
        // Predicated region
        $region45: #{tpu_custom_call.1} parent=15 // pred_check
          %p484 = pneg %p244
        $region46: #{tpu_custom_call.1} parent=15 // pred_check_branch
          %486 = sbr.rel (%p484) target = $region48
        $region47: #{tpu_custom_call.1} parent=15 // pred_region
          %p487 = scmp.lt.s32.totalorder %s38, 1
          %s488 = scalar_select %p487, %s38, 1
          %s489 = scalar_lea.vmem %s7, %s488
        $region48: #{tpu_custom_call.1} parent=15 // pred_fallthru
          _
        // Predicated region
        $region49: #{tpu_custom_call.1} parent=15 // pred_check
          %p490 = pneg %p270
        $region50: #{tpu_custom_call.1} parent=15 // pred_check_branch
          %492 = sbr.rel (%p490) target = $region52
        $region51: #{tpu_custom_call.1} parent=15 // pred_region
          %p493 = scmp.lt.s32.totalorder %s38, 1
          %s494 = scalar_select %p493, %s38, 1
          %s495 = smul.addr %s494, 8
          %s496 = smul.addr %s495, 8
          %s497 = scalar_lea.vmem %s8, %s496
        $region52: #{tpu_custom_call.1} parent=15 // pred_fallthru
          _
        // Predicated region
        $region53: #{tpu_custom_call.1} parent=15 // pred_check
          %p498 = pneg %p296
        $region54: #{tpu_custom_call.1} parent=15 // pred_check_branch
          %500 = sbr.rel (%p498) target = $region56
        $region55: #{tpu_custom_call.1} parent=15 // pred_region
          %p501 = scmp.lt.s32.totalorder %s38, 1
          %s502 = scalar_select %p501, %s38, 1
          %s503 = scalar_lea.vmem %s9, %s502
        $region56: #{tpu_custom_call.1} parent=15 // pred_fallthru
          _
        // Predicated region
        $region57: #{tpu_custom_call.1} parent=15 // pred_check
          %p504 = pneg %p322
        $region58: #{tpu_custom_call.1} parent=15 // pred_check_branch
          %506 = sbr.rel (%p504) target = $region60
        $region59: #{tpu_custom_call.1} parent=15 // pred_region
          %p507 = scmp.lt.s32.totalorder %s38, 1
          %s508 = scalar_select %p507, %s38, 1
          %s509 = scalar_lea.vmem %s10, %s508
        $region60: #{tpu_custom_call.1} parent=15 // pred_fallthru
          _
        // Predicated region
        $region61: #{tpu_custom_call.1} parent=15 // pred_check
          %p510 = pneg %p348
        $region62: #{tpu_custom_call.1} parent=15 // pred_check_branch
          %512 = sbr.rel (%p510) target = $region64
        $region63: #{tpu_custom_call.1} parent=15 // pred_region
          %s513 = sand.u32 %s338, 1
          %s514 = scalar_lea.sflag [#allocation10], %s513
          %s515 = sand.u32 %s338, 1
          %s516 = scalar_lea.vmem [#allocation9], %s515
          %518 = vsyncadd %s514, 0
          %s519 = scalar_lea.hbm %s11, %s38
          %s521 = sshll.u32 %s519, 4
          %s522 = int_to_ptr.hbm [resolvable:$true] %s521
          %s523 = sshll.u32 %s516, 4
          %s524 = int_to_ptr.vmem [resolvable:$true] %s523
          %526 = dma.hbm_to_vmem [thread:$0]  %s522, 16, %s524, %s514
        $region64: #{tpu_custom_call.1} parent=15 // pred_fallthru
          _
      $region16: #{tpu_custom_call.1} parent=5 // pred_fallthru
        _
      %p527 = scmp.le.s32.totalorder 1, %s30
      %p528 = scmp.lt.s32.totalorder %s30, 5
      %p529 = pnand %p527, %p528
      %p530 = pneg %p529
      // Predicated region
      $region65: #{tpu_custom_call.1} parent=5 // pred_check
        _
      $region66: #{tpu_custom_call.1} parent=5 // pred_check_branch
        %532 = sbr.rel (%p529) target = $region68
      $region67: #{tpu_custom_call.1} parent=5 // pred_region
        %s533 = ssub.s32 %s30, 1
        %s534 = sand.u32 %s55, 1
        %s535 = scalar_lea.sflag [#allocation4], %s534
        %s536 = sand.u32 %s55, 1
        %s537 = smul.addr %s536, 8
        %s538 = scalar_lea.vmem [#allocation3], %s537
        // Predicated region
        $region69: #{tpu_custom_call.1} parent=67 // pred_check
          %p539 = pneg %p68
        $region70: #{tpu_custom_call.1} parent=67 // pred_check_branch
          %541 = sbr.rel (%p539) target = $region72
        $region71: #{tpu_custom_call.1} parent=67 // pred_region
          %543 = dma.done %s535, 128
        $region72: #{tpu_custom_call.1} parent=67 // pred_fallthru
          _
        %s544 = sand.u32 %s35, 1
        %s545 = scalar_lea.sflag [#allocation7], %s544
        %s546 = sand.u32 %s159, 1
        %s547 = scalar_lea.vmem [#allocation6], %s546
        // Predicated region
        $region73: #{tpu_custom_call.1} parent=67 // pred_check
          %p548 = pneg %p172
        $region74: #{tpu_custom_call.1} parent=67 // pred_check_branch
          %550 = sbr.rel (%p548) target = $region76
        $region75: #{tpu_custom_call.1} parent=67 // pred_region
          %552 = dma.done %s545, 16
        $region76: #{tpu_custom_call.1} parent=67 // pred_fallthru
          _
        %s553 = sand.u32 %s35, 1
        %s554 = scalar_lea.sflag [#allocation7], %s553
        %s555 = sand.u32 %s185, 1
        %s556 = scalar_lea.vmem [#allocation8], %s555
        // Predicated region
        $region77: #{tpu_custom_call.1} parent=67 // pred_check
          %p557 = pneg %p198
        $region78: #{tpu_custom_call.1} parent=67 // pred_check_branch
          %559 = sbr.rel (%p557) target = $region80
        $region79: #{tpu_custom_call.1} parent=67 // pred_region
          %561 = dma.done %s554, 16
        $region80: #{tpu_custom_call.1} parent=67 // pred_fallthru
          _
        %s562 = sand.u32 %s341, 1
        %s563 = scalar_lea.sflag [#allocation10], %s562
        %s564 = sand.u32 %s341, 1
        %s565 = scalar_lea.vmem [#allocation9], %s564
        // Predicated region
        $region81: #{tpu_custom_call.1} parent=67 // pred_check
          %p566 = pneg %p354
        $region82: #{tpu_custom_call.1} parent=67 // pred_check_branch
          %568 = sbr.rel (%p566) target = $region84
        $region83: #{tpu_custom_call.1} parent=67 // pred_region
          %570 = dma.done %s563, 16
        $region84: #{tpu_custom_call.1} parent=67 // pred_fallthru
          _
        %s571 = sand.u32 %s55, 1
        %s572 = scalar_lea.sflag [#allocation4], %s571
        %s573 = sand.u32 %s55, 1
        %s574 = smul.addr %s573, 8
        %s575 = scalar_lea.vmem [#allocation3], %s574
        %p576 = pneg %p68
        %p577 = pneg %p65
        %p578 = scmp.lt.s32.totalorder %s40, 1
        %s579 = scalar_select %p578, %s40, 1
        %s580 = smul.addr %s579, 4
        %s581 = smul.addr %s580, 8
        %s582 = scalar_lea.vmem %s1, %s581
        %p583 = pneg %p94
        %p584 = pneg %p91
        %p585 = scmp.lt.s32.totalorder %s40, 1
        %s586 = scalar_select %p585, %s40, 1
        %s587 = smul.addr %s586, 4
        %s588 = smul.addr %s587, 8
        %s589 = scalar_lea.vmem %s2, %s588
        %p590 = pneg %p120
        %p591 = pneg %p117
        %p592 = scmp.lt.s32.totalorder %s40, 1
        %s593 = scalar_select %p592, %s40, 1
        %s594 = scalar_lea.vmem %s3, %s593
        %p595 = pneg %p146
        %p596 = pneg %p143
        %s597 = sand.u32 %s35, 1
        %s598 = scalar_lea.sflag [#allocation7], %s597
        %s599 = sand.u32 %s159, 1
        %s600 = scalar_lea.vmem [#allocation6], %s599
        %p601 = pneg %p172
        %p602 = pneg %p169
        %s603 = sand.u32 %s35, 1
        %s604 = scalar_lea.sflag [#allocation7], %s603
        %s605 = sand.u32 %s185, 1
        %s606 = scalar_lea.vmem [#allocation8], %s605
        %p607 = pneg %p198
        %p608 = pneg %p195
        %p609 = scmp.lt.s32.totalorder %s40, 1
        %s610 = scalar_select %p609, %s40, 1
        %s611 = smul.addr %s610, 4
        %s612 = smul.addr %s611, 8
        %s613 = scalar_lea.vmem %s6, %s612
        %p614 = pneg %p224
        %p615 = pneg %p221
        %p616 = scmp.lt.s32.totalorder %s40, 1
        %s617 = scalar_select %p616, %s40, 1
        %s618 = scalar_lea.vmem %s7, %s617
        %p619 = pneg %p250
        %p620 = pneg %p247
        %p621 = scmp.lt.s32.totalorder %s40, 1
        %s622 = scalar_select %p621, %s40, 1
        %s623 = smul.addr %s622, 8
        %s624 = smul.addr %s623, 8
        %s625 = scalar_lea.vmem %s8, %s624
        %p626 = pneg %p276
        %p627 = pneg %p273
        %p628 = scmp.lt.s32.totalorder %s40, 1
        %s629 = scalar_select %p628, %s40, 1
        %s630 = scalar_lea.vmem %s9, %s629
        %p631 = pneg %p302
        %p632 = pneg %p299
        %p633 = scmp.lt.s32.totalorder %s40, 1
        %s634 = scalar_select %p633, %s40, 1
        %s635 = scalar_lea.vmem %s10, %s634
        %p636 = pneg %p328
        %p637 = pneg %p325
        %s638 = sand.u32 %s341, 1
        %s639 = scalar_lea.sflag [#allocation10], %s638
        %s640 = sand.u32 %s341, 1
        %s641 = scalar_lea.vmem [#allocation9], %s640
        %p642 = pneg %p354
        %p643 = pneg %p351
        %p644 = pneg %p382
        %p645 = pneg %p379
        %s646 = sand.u32 %s369, 1
        %s647 = scalar_lea.sflag [#allocation5], %s646
        %s648 = sand.u32 %s369, 1
        %s649 = smul.addr %s648, 8
        %s650 = scalar_lea.vmem [#allocation11], %s649
        %p651 = scmp.lt.s32.totalorder %s40, 1
        %s652 = scalar_select %p651, %s40, 1
        %s653 = smul.addr %s652, 4
        %s654 = smul.addr %s653, 8
        %s655 = scalar_lea.vmem %s1, %s654
        %p656 = scmp.lt.s32.totalorder %s40, 1
        %s657 = scalar_select %p656, %s40, 1
        %s658 = smul.addr %s657, 4
        %s659 = smul.addr %s658, 8
        %s660 = scalar_lea.vmem %s2, %s659
        %p661 = scmp.lt.s32.totalorder %s40, 1
        %s662 = scalar_select %p661, %s40, 1
        %s663 = scalar_lea.vmem %s3, %s662
        %p664 = scmp.lt.s32.totalorder %s40, 1
        %s665 = scalar_select %p664, %s40, 1
        %s666 = smul.addr %s665, 4
        %s667 = smul.addr %s666, 8
        %s668 = scalar_lea.vmem %s6, %s667
        %p669 = scmp.lt.s32.totalorder %s40, 1
        %s670 = scalar_select %p669, %s40, 1
        %s671 = scalar_lea.vmem %s7, %s670
        %p672 = scmp.lt.s32.totalorder %s40, 1
        %s673 = scalar_select %p672, %s40, 1
        %s674 = smul.addr %s673, 8
        %s675 = smul.addr %s674, 8
        %s676 = scalar_lea.vmem %s8, %s675
        %p677 = scmp.lt.s32.totalorder %s40, 1
        %s678 = scalar_select %p677, %s40, 1
        %s679 = scalar_lea.vmem %s9, %s678
        %p680 = scmp.lt.s32.totalorder %s40, 1
        %s681 = scalar_select %p680, %s40, 1
        %s682 = scalar_lea.vmem %s10, %s681
        %p683 = scmp.eq.s32.totalorder %s40, 0
        // Predicated region
        $region85: #{tpu_custom_call.1} parent=67 // pred_check
          %p684 = pneg %p683
        $region86: #{tpu_custom_call.1} parent=67 // pred_check_branch
          %686 = sbr.rel (%p684) target = $region88
        $region87: #{tpu_custom_call.1} parent=67 // pred_region
          %v687 = vld [vmem:[%s538] sm:$0xff]
          %vm688 = vcmask 261120
          %689 = vst.msk [vmem:[#allocation2] sm:$0xff] %vm688, %v687
        $region88: #{tpu_custom_call.1} parent=67 // pred_fallthru
          _
        %v690 = vld [vmem:[#allocation2] sm:$0xff]
        %v691 = vld [vmem:[%s547] sm:$0x1]
        %v692 = vld [vmem:[%s556] sm:$0x1]
        %vm693 = vcmask 261120
        %v694 = vsel %vm693, %v690, 0.0
        %695 = vadd.xlane.f32.xlu0 %v694
        %v696 = vpop.xlane.xlu0 %695
        %v697 = vrcp.pop 32.0
        %v698 = vmul.f32 32.0, %v697
        %v699 = vsub.f32 1.0, %v698
        %v700 = vmul.f32 %v697, %v699
        %v701 = vadd.f32 %v697, %v700
        %vm702 = vweird.f32 %v697
        %v703 = vsel %vm702, %v697, %v701
        %v704 = vmul.f32 %v696, %v703
        %v705 = vsub.f32 %v690, %v704
        %v706 = vmul.f32 %v705, %v705
        %v707 = vsel %vm693, %v706, 0.0
        %708 = vadd.xlane.f32.xlu0 %v707
        %v709 = vpop.xlane.xlu0 %708
        %v710 = vmul.f32 %v709, %v703
        %v711 = vadd.f32 %v710, 1e-05
        %v712 = vrsqrt.pop %v711
        %v713 = vmul.f32 %v712, %v711
        %v714 = vmul.f32 %v713, %v712
        %v715 = vmul.f32 0.5, %v714
        %v716 = vsub.f32 1.5, %v715
        %v717 = vmul.f32 %v712, %v716
        %vm718 = vweird.f32 %v711
        %vm719 = vweird.f32 %v712
        %vm720 = vmor %vm718, %vm719
        %v721 = vsel %vm720, %v712, %v717
        %v722 = vmul.f32 %v705, %v721
        %v724 = vperm.slane %v691, 0
        %v726 = vmul.f32 %v722, %v724
        %v728 = vperm.slane %v692, 0
        %v730 = vadd.f32 %v726, %v728
        %v731 = vld [vmem:[%s655] sm:$0xff]
        %v732 = vld [vmem:[%s655 + $0x8] sm:$0xff]
        %v733 = vld [vmem:[%s655 + $0x10] sm:$0xff]
        %v734 = vld [vmem:[%s655 + $0x18] sm:$0xff]
        %v736 = vsel %vm693, %v730, 0
        %738 = vmatpush.msra.mxu0 0.0
        %739 = vmatpush.msra.mxu0 0.0
        %740 = vmatpush.msra.mxu0 0.0
        %741 = vmatpush.msra.mxu0 0.0
        %742 = vmatpush.msra.mxu0 0.0
        %743 = vmatpush.msra.mxu0 0.0
        %744 = vmatpush.msra.mxu0 0.0
        %745 = vmatpush.msra.mxu0 0.0
        %746 = vmatpush.msra.mxu0 0.0
        %747 = vmatpush.msra.mxu0 0.0
        %748 = vmatpush.msra.mxu0 0.0
        %749 = vmatpush.msra.mxu0 0.0
        %750 = vmatpush.msra.mxu0 %v734
        %751 = vmatpush.msra.mxu0 %v733
        %752 = vmatpush.msra.mxu0 %v732
        %753 = vmatpush.msra.mxu0 %v731
        %754 = vmatmul.f32.gmra.mxu0 %v736
        %v755 = vpop.f32.mrf.mxu0
        %v756 = vadd.f32 0.0, %v755
        %757 = vdwg.mxu0
        %v758 = vmul.f32 %v756, 0.17677669
        %760 = vrot.lane.b32.xlu0 %v758, 120
        %v761 = vpop.permute.xlu0 %760
        %762 = vrot.lane.b32.xlu0 %v758, 112
        %v763 = vpop.permute.xlu0 %762
        %764 = vrot.lane.b32.xlu0 %v758, 104
        %v765 = vpop.permute.xlu0 %764
        %767 = vrot.lane.b32.xlu0 %v756, 120
        %v768 = vpop.permute.xlu0 %767
        %769 = vrot.lane.b32.xlu0 %v756, 112
        %v770 = vpop.permute.xlu0 %769
        %771 = vrot.lane.b32.xlu0 %v756, 104
        %v772 = vpop.permute.xlu0 %771
        %773 = vrot.lane.b32.xlu0 %v756, 96
        %v774 = vpop.permute.xlu0 %773
        %vm775 = vcmask 64512
        %v776 = vsel %vm775, %v758, 0
        %v778 = vsel %vm775, %v774, 0
        %780 = vmatpush.xpose.msra.mxu0 0.0
        %781 = vmatpush.xpose.msra.mxu0 0.0
        %782 = vmatpush.xpose.msra.mxu0 0.0
        %783 = vmatpush.xpose.msra.mxu0 0.0
        %784 = vmatpush.xpose.msra.mxu0 0.0
        %785 = vmatpush.xpose.msra.mxu0 0.0
        %786 = vmatpush.xpose.msra.mxu0 0.0
        %787 = vmatpush.xpose.msra.mxu0 0.0
        %788 = vmatpush.xpose.msra.mxu0 0.0
        %789 = vmatpush.xpose.msra.mxu0 0.0
        %790 = vmatpush.xpose.msra.mxu0 0.0
        %791 = vmatpush.xpose.msra.mxu0 0.0
        %792 = vmatpush.xpose.msra.mxu0 0.0
        %793 = vmatpush.xpose.msra.mxu0 0.0
        %794 = vmatpush.xpose.msra.mxu0 0.0
        %795 = vmatpush.xpose.msra.mxu0 %v778
        %796 = vmatmul.f32.gmra.mxu0 %v776
        %v797 = vpop.f32.mrf.mxu0
        %v798 = vadd.f32 0.0, %v797
        %799 = vdwg.mxu0
        %800 = vrot.lane.b32.xlu0 %v768, 96
        %v801 = vpop.permute.xlu0 %800
        %v802 = vsel %vm775, %v761, 0
        %v804 = vsel %vm775, %v801, 0
        %806 = vmatpush.xpose.msra.mxu0 0.0
        %807 = vmatpush.xpose.msra.mxu0 0.0
        %808 = vmatpush.xpose.msra.mxu0 0.0
        %809 = vmatpush.xpose.msra.mxu0 0.0
        %810 = vmatpush.xpose.msra.mxu0 0.0
        %811 = vmatpush.xpose.msra.mxu0 0.0
        %812 = vmatpush.xpose.msra.mxu0 0.0
        %813 = vmatpush.xpose.msra.mxu0 0.0
        %814 = vmatpush.xpose.msra.mxu0 0.0
        %815 = vmatpush.xpose.msra.mxu0 0.0
        %816 = vmatpush.xpose.msra.mxu0 0.0
        %817 = vmatpush.xpose.msra.mxu0 0.0
        %818 = vmatpush.xpose.msra.mxu0 0.0
        %819 = vmatpush.xpose.msra.mxu0 0.0
        %820 = vmatpush.xpose.msra.mxu0 0.0
        %821 = vmatpush.xpose.msra.mxu0 %v804
        %822 = vmatmul.f32.gmra.mxu0 %v802
        %v823 = vpop.f32.mrf.mxu0
        %v824 = vadd.f32 0.0, %v823
        %825 = vdwg.mxu0
        %826 = vrot.lane.b32.xlu0 %v770, 96
        %v827 = vpop.permute.xlu0 %826
        %v828 = vsel %vm775, %v763, 0
        %v830 = vsel %vm775, %v827, 0
        %832 = vmatpush.xpose.msra.mxu0 0.0
        %833 = vmatpush.xpose.msra.mxu0 0.0
        %834 = vmatpush.xpose.msra.mxu0 0.0
        %835 = vmatpush.xpose.msra.mxu0 0.0
        %836 = vmatpush.xpose.msra.mxu0 0.0
        %837 = vmatpush.xpose.msra.mxu0 0.0
        %838 = vmatpush.xpose.msra.mxu0 0.0
        %839 = vmatpush.xpose.msra.mxu0 0.0
        %840 = vmatpush.xpose.msra.mxu0 0.0
        %841 = vmatpush.xpose.msra.mxu0 0.0
        %842 = vmatpush.xpose.msra.mxu0 0.0
        %843 = vmatpush.xpose.msra.mxu0 0.0
        %844 = vmatpush.xpose.msra.mxu0 0.0
        %845 = vmatpush.xpose.msra.mxu0 0.0
        %846 = vmatpush.xpose.msra.mxu0 0.0
        %847 = vmatpush.xpose.msra.mxu0 %v830
        %848 = vmatmul.f32.gmra.mxu0 %v828
        %v849 = vpop.f32.mrf.mxu0
        %v850 = vadd.f32 0.0, %v849
        %851 = vdwg.mxu0
        %852 = vrot.lane.b32.xlu0 %v772, 96
        %v853 = vpop.permute.xlu0 %852
        %v854 = vsel %vm775, %v765, 0
        %v856 = vsel %vm775, %v853, 0
        %858 = vmatpush.xpose.msra.mxu0 0.0
        %859 = vmatpush.xpose.msra.mxu0 0.0
        %860 = vmatpush.xpose.msra.mxu0 0.0
        %861 = vmatpush.xpose.msra.mxu0 0.0
        %862 = vmatpush.xpose.msra.mxu0 0.0
        %863 = vmatpush.xpose.msra.mxu0 0.0
        %864 = vmatpush.xpose.msra.mxu0 0.0
        %865 = vmatpush.xpose.msra.mxu0 0.0
        %866 = vmatpush.xpose.msra.mxu0 0.0
        %867 = vmatpush.xpose.msra.mxu0 0.0
        %868 = vmatpush.xpose.msra.mxu0 0.0
        %869 = vmatpush.xpose.msra.mxu0 0.0
        %870 = vmatpush.xpose.msra.mxu0 0.0
        %871 = vmatpush.xpose.msra.mxu0 0.0
        %872 = vmatpush.xpose.msra.mxu0 0.0
        %873 = vmatpush.xpose.msra.mxu0 %v856
        %874 = vmatmul.f32.gmra.mxu0 %v854
        %v875 = vpop.f32.mrf.mxu0
        %v876 = vadd.f32 0.0, %v875
        %877 = vdwg.mxu0
        %v878 = vsel %vm775, %v798, -inf
        %879 = vmax.xlane.f32.xlu0 %v878
        %v880 = vpop.xlane.xlu0 %879
        %v881 = vsel %vm775, %v824, -inf
        %882 = vmax.xlane.f32.xlu0 %v881
        %v883 = vpop.xlane.xlu0 %882
        %v884 = vsel %vm775, %v850, -inf
        %885 = vmax.xlane.f32.xlu0 %v884
        %v886 = vpop.xlane.xlu0 %885
        %v887 = vsel %vm775, %v876, -inf
        %888 = vmax.xlane.f32.xlu0 %v887
        %v889 = vpop.xlane.xlu0 %888
        %v890 = vsub.f32 %v798, %v880
        %v891 = vsub.f32 %v824, %v883
        %v892 = vsub.f32 %v850, %v886
        %v893 = vsub.f32 %v876, %v889
        %v894 = vmul.f32 %v890, 1.442695
        %v895 = vpow.pop %v894
        %v896 = vmul.f32 %v891, 1.442695
        %v897 = vpow.pop %v896
        %v898 = vmul.f32 %v892, 1.442695
        %v899 = vpow.pop %v898
        %v900 = vmul.f32 %v893, 1.442695
        %v901 = vpow.pop %v900
        %v902 = vsel %vm775, %v895, 0.0
        %903 = vadd.xlane.f32.xlu0 %v902
        %v904 = vpop.xlane.xlu0 %903
        %v905 = vsel %vm775, %v897, 0.0
        %906 = vadd.xlane.f32.xlu0 %v905
        %v907 = vpop.xlane.xlu0 %906
        %v908 = vsel %vm775, %v899, 0.0
        %909 = vadd.xlane.f32.xlu0 %v908
        %v910 = vpop.xlane.xlu0 %909
        %v911 = vsel %vm775, %v901, 0.0
        %912 = vadd.xlane.f32.xlu0 %v911
        %v913 = vpop.xlane.xlu0 %912
        %v914 = vrcp.pop %v904
        %v915 = vmul.f32 %v904, %v914
        %v916 = vsub.f32 1.0, %v915
        %v917 = vmul.f32 %v914, %v916
        %v918 = vadd.f32 %v914, %v917
        %vm919 = vweird.f32 %v904
        %vm920 = vweird.f32 %v914
        %vm921 = vmor %vm919, %vm920
        %v922 = vsel %vm921, %v914, %v918
        %v923 = vand.u32 2147483647, %v904
        %vm924 = vcmp.eq.f32.partialorder %v923, 8.507059e+37
        %v925 = vand.u32 %v904, 2147483648
        %v926 = vor.u32 1.1754944e-38, %v925
        %v927 = vsel %vm924, %v926, %v922
        %v928 = vmul.f32 %v895, %v927
        %v929 = vrcp.pop %v907
        %v930 = vmul.f32 %v907, %v929
        %v931 = vsub.f32 1.0, %v930
        %v932 = vmul.f32 %v929, %v931
        %v933 = vadd.f32 %v929, %v932
        %vm934 = vweird.f32 %v907
        %vm935 = vweird.f32 %v929
        %vm936 = vmor %vm934, %vm935
        %v937 = vsel %vm936, %v929, %v933
        %v938 = vand.u32 2147483647, %v907
        %vm939 = vcmp.eq.f32.partialorder %v938, 8.507059e+37
        %v940 = vand.u32 %v907, 2147483648
        %v941 = vor.u32 1.1754944e-38, %v940
        %v942 = vsel %vm939, %v941, %v937
        %v943 = vmul.f32 %v897, %v942
        %v944 = vrcp.pop %v910
        %v945 = vmul.f32 %v910, %v944
        %v946 = vsub.f32 1.0, %v945
        %v947 = vmul.f32 %v944, %v946
        %v948 = vadd.f32 %v944, %v947
        %vm949 = vweird.f32 %v910
        %vm950 = vweird.f32 %v944
        %vm951 = vmor %vm949, %vm950
        %v952 = vsel %vm951, %v944, %v948
        %v953 = vand.u32 2147483647, %v910
        %vm954 = vcmp.eq.f32.partialorder %v953, 8.507059e+37
        %v955 = vand.u32 %v910, 2147483648
        %v956 = vor.u32 1.1754944e-38, %v955
        %v957 = vsel %vm954, %v956, %v952
        %v958 = vmul.f32 %v899, %v957
        %v959 = vrcp.pop %v913
        %v960 = vmul.f32 %v913, %v959
        %v961 = vsub.f32 1.0, %v960
        %v962 = vmul.f32 %v959, %v961
        %v963 = vadd.f32 %v959, %v962
        %vm964 = vweird.f32 %v913
        %vm965 = vweird.f32 %v959
        %vm966 = vmor %vm964, %vm965
        %v967 = vsel %vm966, %v959, %v963
        %v968 = vand.u32 2147483647, %v913
        %vm969 = vcmp.eq.f32.partialorder %v968, 8.507059e+37
        %v970 = vand.u32 %v913, 2147483648
        %v971 = vor.u32 1.1754944e-38, %v970
        %v972 = vsel %vm969, %v971, %v967
        %v973 = vmul.f32 %v901, %v972
        %974 = vrot.lane.b32.xlu0 %v756, 64
        %v975 = vpop.permute.xlu0 %974
        %v978 = vsel %vm775, %v928, 0
        %980 = vmatpush.msra.mxu0 0.0
        %981 = vmatpush.msra.mxu0 0.0
        %982 = vmatpush.msra.mxu0 0.0
        %983 = vmatpush.msra.mxu0 0.0
        %984 = vmatpush.msra.mxu0 0.0
        %985 = vmatpush.msra.mxu0 0.0
        %986 = vmatpush.msra.mxu0 0.0
        %987 = vmatpush.msra.mxu0 0.0
        %988 = vmatpush.msra.mxu0 0.0
        %989 = vmatpush.msra.mxu0 0.0
        %990 = vmatpush.msra.mxu0 0.0
        %991 = vmatpush.msra.mxu0 0.0
        %992 = vmatpush.msra.mxu0 0.0
        %993 = vmatpush.msra.mxu0 0.0
        %994 = vmatpush.msra.mxu0 0.0
        %995 = vmatpush.msra.mxu0 %v975
        %996 = vmatmul.f32.gmra.mxu0 %v978
        %v997 = vpop.f32.mrf.mxu0
        %v998 = vadd.f32 0.0, %v997
        %999 = vdwg.mxu0
        %1000 = vrot.lane.b32.xlu0 %v768, 64
        %v1001 = vpop.permute.xlu0 %1000
        %v1004 = vsel %vm775, %v943, 0
        %1006 = vmatpush.msra.mxu0 0.0
        %1007 = vmatpush.msra.mxu0 0.0
        %1008 = vmatpush.msra.mxu0 0.0
        %1009 = vmatpush.msra.mxu0 0.0
        %1010 = vmatpush.msra.mxu0 0.0
        %1011 = vmatpush.msra.mxu0 0.0
        %1012 = vmatpush.msra.mxu0 0.0
        %1013 = vmatpush.msra.mxu0 0.0
        %1014 = vmatpush.msra.mxu0 0.0
        %1015 = vmatpush.msra.mxu0 0.0
        %1016 = vmatpush.msra.mxu0 0.0
        %1017 = vmatpush.msra.mxu0 0.0
        %1018 = vmatpush.msra.mxu0 0.0
        %1019 = vmatpush.msra.mxu0 0.0
        %1020 = vmatpush.msra.mxu0 0.0
        %1021 = vmatpush.msra.mxu0 %v1001
        %1022 = vmatmul.f32.gmra.mxu0 %v1004
        %v1023 = vpop.f32.mrf.mxu0
        %v1024 = vadd.f32 0.0, %v1023
        %1025 = vdwg.mxu0
        %1026 = vrot.lane.b32.xlu0 %v770, 64
        %v1027 = vpop.permute.xlu0 %1026
        %v1030 = vsel %vm775, %v958, 0
        %1032 = vmatpush.msra.mxu0 0.0
        %1033 = vmatpush.msra.mxu0 0.0
        %1034 = vmatpush.msra.mxu0 0.0
        %1035 = vmatpush.msra.mxu0 0.0
        %1036 = vmatpush.msra.mxu0 0.0
        %1037 = vmatpush.msra.mxu0 0.0
        %1038 = vmatpush.msra.mxu0 0.0
        %1039 = vmatpush.msra.mxu0 0.0
        %1040 = vmatpush.msra.mxu0 0.0
        %1041 = vmatpush.msra.mxu0 0.0
        %1042 = vmatpush.msra.mxu0 0.0
        %1043 = vmatpush.msra.mxu0 0.0
        %1044 = vmatpush.msra.mxu0 0.0
        %1045 = vmatpush.msra.mxu0 0.0
        %1046 = vmatpush.msra.mxu0 0.0
        %1047 = vmatpush.msra.mxu0 %v1027
        %1048 = vmatmul.f32.gmra.mxu0 %v1030
        %v1049 = vpop.f32.mrf.mxu0
        %v1050 = vadd.f32 0.0, %v1049
        %1051 = vdwg.mxu0
        %1052 = vrot.lane.b32.xlu0 %v772, 64
        %v1053 = vpop.permute.xlu0 %1052
        %v1056 = vsel %vm775, %v973, 0
        %1058 = vmatpush.msra.mxu0 0.0
        %1059 = vmatpush.msra.mxu0 0.0
        %1060 = vmatpush.msra.mxu0 0.0
        %1061 = vmatpush.msra.mxu0 0.0
        %1062 = vmatpush.msra.mxu0 0.0
        %1063 = vmatpush.msra.mxu0 0.0
        %1064 = vmatpush.msra.mxu0 0.0
        %1065 = vmatpush.msra.mxu0 0.0
        %1066 = vmatpush.msra.mxu0 0.0
        %1067 = vmatpush.msra.mxu0 0.0
        %1068 = vmatpush.msra.mxu0 0.0
        %1069 = vmatpush.msra.mxu0 0.0
        %1070 = vmatpush.msra.mxu0 0.0
        %1071 = vmatpush.msra.mxu0 0.0
        %1072 = vmatpush.msra.mxu0 0.0
        %1073 = vmatpush.msra.mxu0 %v1053
        %1074 = vmatmul.f32.gmra.mxu0 %v1056
        %v1075 = vpop.f32.mrf.mxu0
        %v1076 = vadd.f32 0.0, %v1075
        %1077 = vdwg.mxu0
        %1079 = vrot.lane.b32.xlu0 %v1024, 8
        %v1080 = vpop.permute.xlu0 %1079
        %1083 = vrot.lane.b32.xlu0 %v1050, 16
        %v1084 = vpop.permute.xlu0 %1083
        %1087 = vrot.lane.b32.xlu0 %v1076, 24
        %v1088 = vpop.permute.xlu0 %1087
        %v1090 = vsel %vm775, %v998, %v1080
        %vm1091 = vcmask 130048
        %v1092 = vsel %vm1091, %v1090, %v1084
        %vm1093 = vcmask 195584
        %v1094 = vsel %vm1093, %v1092, %v1088
        %v1095 = vld [vmem:[%s660] sm:$0xff]
        %v1096 = vld [vmem:[%s660 + $0x8] sm:$0xff]
        %v1097 = vld [vmem:[%s660 + $0x10] sm:$0xff]
        %v1098 = vld [vmem:[%s660 + $0x18] sm:$0xff]
        %v1100 = vsel %vm693, %v1094, 0
        %1102 = vmatpush.msra.mxu0 0.0
        %1103 = vmatpush.msra.mxu0 0.0
        %1104 = vmatpush.msra.mxu0 0.0
        %1105 = vmatpush.msra.mxu0 0.0
        %1106 = vmatpush.msra.mxu0 0.0
        %1107 = vmatpush.msra.mxu0 0.0
        %1108 = vmatpush.msra.mxu0 0.0
        %1109 = vmatpush.msra.mxu0 0.0
        %1110 = vmatpush.msra.mxu0 0.0
        %1111 = vmatpush.msra.mxu0 0.0
        %1112 = vmatpush.msra.mxu0 0.0
        %1113 = vmatpush.msra.mxu0 0.0
        %1114 = vmatpush.msra.mxu0 %v1098
        %1115 = vmatpush.msra.mxu0 %v1097
        %1116 = vmatpush.msra.mxu0 %v1096
        %1117 = vmatpush.msra.mxu0 %v1095
        %1118 = vmatmul.f32.gmra.mxu0 %v1100
        %v1119 = vpop.f32.mrf.mxu0
        %v1120 = vadd.f32 0.0, %v1119
        %1121 = vdwg.mxu0
        %v1122 = vadd.f32 %v690, %v1120
        %v1123 = vld [vmem:[%s663] sm:$0x1]
        %v1125 = vperm.slane %v1123, 0
        %v1127 = vadd.f32 %v1122, %v1125
        %v1128 = vld [vmem:[%s682] sm:$0x1]
        %v1129 = vld [vmem:[%s565] sm:$0x1]
        %v1130 = vsel %vm693, %v1127, 0.0
        %1131 = vadd.xlane.f32.xlu0 %v1130
        %v1132 = vpop.xlane.xlu0 %1131
        %v1133 = vmul.f32 %v1132, %v703
        %v1134 = vsub.f32 %v1127, %v1133
        %v1135 = vmul.f32 %v1134, %v1134
        %v1136 = vsel %vm693, %v1135, 0.0
        %1137 = vadd.xlane.f32.xlu0 %v1136
        %v1138 = vpop.xlane.xlu0 %1137
        %v1139 = vmul.f32 %v1138, %v703
        %v1140 = vadd.f32 %v1139, 1e-05
        %v1141 = vrsqrt.pop %v1140
        %v1142 = vmul.f32 %v1141, %v1140
        %v1143 = vmul.f32 %v1142, %v1141
        %v1144 = vmul.f32 0.5, %v1143
        %v1145 = vsub.f32 1.5, %v1144
        %v1146 = vmul.f32 %v1141, %v1145
        %vm1147 = vweird.f32 %v1140
        %vm1148 = vweird.f32 %v1141
        %vm1149 = vmor %vm1147, %vm1148
        %v1150 = vsel %vm1149, %v1141, %v1146
        %v1151 = vmul.f32 %v1134, %v1150
        %v1153 = vperm.slane %v1128, 0
        %v1155 = vmul.f32 %v1151, %v1153
        %v1157 = vperm.slane %v1129, 0
        %v1159 = vadd.f32 %v1155, %v1157
        %v1160 = vld [vmem:[%s668] sm:$0xff]
        %v1161 = vld [vmem:[%s668 + $0x8] sm:$0xff]
        %v1162 = vld [vmem:[%s668 + $0x10] sm:$0xff]
        %v1163 = vld [vmem:[%s668 + $0x18] sm:$0xff]
        %v1164 = vld [vmem:[%s671] sm:$0x1]
        %v1166 = vperm.slane %v1164, 0
        %v1169 = vsel %vm693, %v1159, 0
        %1171 = vmatpush.msra.mxu0 0.0
        %1172 = vmatpush.msra.mxu0 0.0
        %1173 = vmatpush.msra.mxu0 0.0
        %1174 = vmatpush.msra.mxu0 0.0
        %1175 = vmatpush.msra.mxu0 0.0
        %1176 = vmatpush.msra.mxu0 0.0
        %1177 = vmatpush.msra.mxu0 0.0
        %1178 = vmatpush.msra.mxu0 0.0
        %1179 = vmatpush.msra.mxu0 0.0
        %1180 = vmatpush.msra.mxu0 0.0
        %1181 = vmatpush.msra.mxu0 0.0
        %1182 = vmatpush.msra.mxu0 0.0
        %1183 = vmatpush.msra.mxu0 %v1163
        %1184 = vmatpush.msra.mxu0 %v1162
        %1185 = vmatpush.msra.mxu0 %v1161
        %1186 = vmatpush.msra.mxu0 %v1160
        %1187 = vmatmul.f32.gmra.mxu0 %v1169
        %v1188 = vpop.f32.mrf.mxu0
        %v1189 = vadd.f32 %v1166, %v1188
        %1190 = vdwg.mxu0
        %v1191 = vmax.f32 %v1189, 0.0
        %v1192 = vld [vmem:[%s676] sm:$0xff]
        %v1193 = vld [vmem:[%s676 + $0x8] sm:$0xff]
        %v1194 = vld [vmem:[%s676 + $0x10] sm:$0xff]
        %v1195 = vld [vmem:[%s676 + $0x18] sm:$0xff]
        %v1196 = vld [vmem:[%s676 + $0x20] sm:$0xff]
        %v1197 = vld [vmem:[%s676 + $0x28] sm:$0xff]
        %v1198 = vld [vmem:[%s676 + $0x30] sm:$0xff]
        %v1199 = vld [vmem:[%s676 + $0x38] sm:$0xff]
        %vm1200 = vcmask 523264
        %v1202 = vsel %vm1200, %v1191, 0
        %1204 = vmatpush.msra.mxu0 0.0
        %1205 = vmatpush.msra.mxu0 0.0
        %1206 = vmatpush.msra.mxu0 0.0
        %1207 = vmatpush.msra.mxu0 0.0
        %1208 = vmatpush.msra.mxu0 0.0
        %1209 = vmatpush.msra.mxu0 0.0
        %1210 = vmatpush.msra.mxu0 0.0
        %1211 = vmatpush.msra.mxu0 0.0
        %1212 = vmatpush.msra.mxu0 %v1199
        %1213 = vmatpush.msra.mxu0 %v1198
        %1214 = vmatpush.msra.mxu0 %v1197
        %1215 = vmatpush.msra.mxu0 %v1196
        %1216 = vmatpush.msra.mxu0 %v1195
        %1217 = vmatpush.msra.mxu0 %v1194
        %1218 = vmatpush.msra.mxu0 %v1193
        %1219 = vmatpush.msra.mxu0 %v1192
        %1220 = vmatmul.f32.gmra.mxu0 %v1202
        %v1221 = vpop.f32.mrf.mxu0
        %v1222 = vadd.f32 0.0, %v1221
        %1223 = vdwg.mxu0
        %v1224 = vadd.f32 %v1127, %v1222
        %v1225 = vld [vmem:[%s679] sm:$0x1]
        %v1227 = vperm.slane %v1225, 0
        %v1229 = vadd.f32 %v1224, %v1227
        %1230 = vst.msk [vmem:[#allocation2] sm:$0xff] %vm693, %v1229
        %1231 = vst.msk [vmem:[%s650] sm:$0xff] %vm693, %v1229
        %s1232 = sand.u32 %s369, 1
        %s1233 = scalar_lea.sflag [#allocation5], %s1232
        %s1234 = sand.u32 %s369, 1
        %s1235 = smul.addr %s1234, 8
        %s1236 = scalar_lea.vmem [#allocation11], %s1235
        // Predicated region
        $region89: #{tpu_custom_call.1} parent=67 // pred_check
          %p1237 = pneg %p379
        $region90: #{tpu_custom_call.1} parent=67 // pred_check_branch
          %1239 = sbr.rel (%p1237) target = $region92
        $region91: #{tpu_custom_call.1} parent=67 // pred_region
          %1241 = vsyncadd %s1233, 0
          %s1242 = smul.addr %s40, 2
          %s1243 = sadd.s32 %s39, %s1242
          %s1244 = smul.addr %s1243, 8
          %s1245 = scalar_lea.hbm %s12, %s1244
          %s1247 = sshll.u32 %s1236, 4
          %s1248 = int_to_ptr.vmem [resolvable:$true] %s1247
          %s1249 = sshll.u32 %s1245, 4
          %s1250 = int_to_ptr.hbm [resolvable:$true] %s1249
          %1252 = dma.vmem_to_hbm [thread:$0]  %s1248, 128, %s1250, %s1233
        $region92: #{tpu_custom_call.1} parent=67 // pred_fallthru
          _
      $region68: #{tpu_custom_call.1} parent=5 // pred_fallthru
        _
      %p1253 = scmp.le.s32.totalorder 2, %s30
      // Predicated region
      $region93: #{tpu_custom_call.1} parent=5 // pred_check
        %p1254 = pneg %p1253
      $region94: #{tpu_custom_call.1} parent=5 // pred_check_branch
        %1256 = sbr.rel (%p1254) target = $region96
      $region95: #{tpu_custom_call.1} parent=5 // pred_region
        %s1257 = ssub.s32 %s30, 2
        // Predicated region
        $region97: #{tpu_custom_call.1} parent=95 // pred_check
          %p1258 = pneg %p385
        $region98: #{tpu_custom_call.1} parent=95 // pred_check_branch
          %1260 = sbr.rel (%p1258) target = $region100
        $region99: #{tpu_custom_call.1} parent=95 // pred_region
          %s1261 = sand.u32 %s370, 1
          %s1262 = scalar_lea.sflag [#allocation5], %s1261
          %s1263 = sand.u32 %s370, 1
          %s1264 = smul.addr %s1263, 8
          %s1265 = scalar_lea.vmem [#allocation11], %s1264
          %1267 = dma.done %s1262, 128
        $region100: #{tpu_custom_call.1} parent=95 // pred_fallthru
          _
      $region96: #{tpu_custom_call.1} parent=5 // pred_fallthru
        _
    $region6: #{tpu_custom_call.1} parent=1 // loop_footer
      %s34 = sadd.s32 1, %s30
    $region7: #{tpu_custom_call.1} parent=1 // loop_footer_branch
      %29 = sbr.rel target = $region3
    $region8: #{tpu_custom_call.1} parent=1 // loop_exit
      _
    %1268 = vsyncpa [#allocation4], 1
    %s1269 = scalar_lea.sflag [#allocation4], 1
    %1270 = vsyncpa %s1269, 1
    %1271 = vsyncpa [#allocation7], 1
    %s1272 = scalar_lea.sflag [#allocation7], 1
    %1273 = vsyncpa %s1272, 1
    %1274 = vsyncpa [#allocation10], 1
    %s1275 = scalar_lea.sflag [#allocation10], 1
    %1276 = vsyncpa %s1275, 1
    %1277 = vsyncpa [#allocation5], 1
    %s1278 = scalar_lea.sflag [#allocation5], 1
    %1279 = vsyncpa %s1278, 1

</llo_original>
